<compile_context>
chip_gen: v5e
topology: v5e:2x2
jax: 0.10.0
libtpu: 0.0.40
codegen_flags: <defaults>
</compile_context>

<pallas_src>
import functools

import jax
import jax.numpy as jnp
from jax.experimental import pallas as pl
from jax.experimental.pallas import tpu as pltpu

NEG_SLOPE = 0.01       # torch.nn.LeakyReLU default negative_slope
BN_EPS = 1e-5          # torch.nn.BatchNorm1d default eps
TILE_GRAIN = 16        # row-tile grain valid for both f32 (8) and packed bf16 (16) tiling
LANE = 128             # lane width for dense (unmasked) output stores


def _round_up(n, m):
    return ((n + m - 1) // m) * m


def _lrelu_bf16(x):
    """LeakyReLU computed in f32 (v5e-friendly), returned as a bf16 MXU operand."""
    x = x.astype(jnp.float32)
    return jnp.where(x >= 0, x, NEG_SLOPE * x).astype(jnp.bfloat16)


def _pad_rows(x, n_pad):
    n = x.shape[0]
    if n_pad == n:
        return x
    return jnp.pad(x, ((0, n_pad - n), (0, 0)))


def _row_spec(tile, width):
    return pl.BlockSpec((tile, width), lambda i: (i, 0))


def _w_spec(shape, pipeline_mode):
    # weights / biases: same (full) block at every grid step -> resident in VMEM
    idx = lambda i: (0,) * len(shape)
    if pipeline_mode is None:
        return pl.BlockSpec(shape, idx)
    return pl.BlockSpec(shape, idx, pipeline_mode=pipeline_mode)


@functools.lru_cache(maxsize=1)
def _hw_tuning():
    """(vmem_limit_bytes, max_row_tile) per TPU generation."""
    mib = 1024 * 1024
    try:
        cap = int(pltpu.get_tpu_info().vmem_capacity_bytes)
    except Exception:
        cap = 64 * mib                      # conservative (v7x-sized) fallback
    if cap >= 100 * mib:                    # v5e / v6e: 128 MiB physical VMEM
        return 96 * mib, 1024
    return 48 * mib, 512                    # v7x: 64 MiB physical VMEM


def _choose_tile(n, max_tile):
    ng = _round_up(max(n, 1), TILE_GRAIN)
    if ng <= TILE_GRAIN:
        return TILE_GRAIN
    # Aim for >= 2 grid steps so the "parallel" row axis can shard across v7x's
    # two TensorCores; padding waste stays < TILE_GRAIN rows.
    return min(max_tile, _round_up((ng + 1) // 2, TILE_GRAIN))


def _run_pallas(kernel, out_shape, grid, row_specs, out_spec, rows, weights,
                cost, vmem_limit):
    def build(weight_mode):
        return pl.pallas_call(
            kernel,
            out_shape=out_shape,
            grid=grid,
            in_specs=list(row_specs) + [_w_spec(w.shape, weight_mode) for w in weights],
            out_specs=out_spec,
            compiler_params=pltpu.CompilerParams(
                dimension_semantics=("parallel",), vmem_limit_bytes=vmem_limit),
            cost_estimate=cost,
        )

    try:
        # Grid-invariant weights: single-buffer them (halves resident weight VMEM,
        # which matters under v7x's 64 MiB at production hidden/output dims).
        return build(pl.Buffered(1))(*rows, *weights)
    except Exception:
        # pipeline_mode=Buffered(1) unsupported in this build -> default buffering.
        return build(None)(*rows, *weights)


# --------------------------------------------------------------------------- #
# Fused entity-side kernel
#   folded pos_embed  : ReLU(box9 @ W_pos + b_pos)        (Linear+BN+Linear fold)
#   word embedding    : pred_score_dist @ embedding.weight (sgcls soft embedding)
#   ent4rel_hidden_fc : LeakyReLU(cat([ent, word, pos])) @ W + b   (W row-split)
#   updim_fc          : LeakyReLU(h) @ W_up + b_up  -> lane-padded (tile, 2H_pad)
# --------------------------------------------------------------------------- #

def _entity_kernel(ent_ref, dist_ref, box9_ref,
                   pos_w, pos_b, emb_w, hwe, hww, hwp, hb,
                   uw, ub, o_ref):
    f32, bf16 = jnp.float32, jnp.bfloat16
    # folded pos_embed
    pos = jnp.maximum(
        jnp.dot(box9_ref[...], pos_w[...], preferred_element_type=f32) + pos_b[...], 0.0)
    # sgcls soft word embedding
    word = jnp.dot(dist_ref[...], emb_w[...], preferred_element_type=f32)
    # ent4rel_hidden_fc: LeakyReLU(cat([ent, word, pos])) @ W + b
    # (W split by input-dim blocks == single wide matmul; LeakyReLU(pos) == pos.)
    h = (jnp.dot(_lrelu_bf16(ent_ref[...]), hwe[...], preferred_element_type=f32)
         + jnp.dot(_lrelu_bf16(word), hww[...], preferred_element_type=f32)
         + jnp.dot(pos.astype(bf16), hwp[...], preferred_element_type=f32)
         + hb[...])
    # pairwise_obj_feat_updim_fc -> lane-dense, bf16 head/tail slab
    o_ref[...] = (jnp.dot(_lrelu_bf16(h), uw[...], preferred_element_type=f32)
                  + ub[...]).astype(o_ref.dtype)


def entity_fused(kp, ent_feat, dist, box9):
    n = ent_feat.shape[0]
    h2, h2p = kp['h2'], kp['h2_pad']
    if n == 0:
        return jnp.zeros((0, h2), jnp.bfloat16)

    d, c = ent_feat.shape[1], dist.shape[1]
    geo = kp['hid_w_pos'].shape[0]
    e = kp['emb_w'].shape[1]
    h = kp['hid_b'].shape[1]

    vmem_limit, max_tile = _hw_tuning()
    tile = _choose_tile(n, max_tile)
    n_pad = _round_up(n, tile)

    rows = [_pad_rows(ent_feat, n_pad).astype(jnp.bfloat16),
            _pad_rows(dist, n_pad).astype(jnp.bfloat16),
            _pad_rows(box9, n_pad).astype(jnp.bfloat16)]
    weights = [kp['pos_w'], kp['pos_b'], kp['emb_w'],
               kp['hid_w_ent'], kp['hid_w_word'], kp['hid_w_pos'], kp['hid_b'],
               kp['updim_w'], kp['updim_b']]

    weight_bytes = sum(int(w.size) * w.dtype.itemsize for w in weights)
    flops = 2 * n_pad * (9 * geo + c * e + (d + e + geo) * h + h * h2p)
    cost = pl.CostEstimate(
        flops=int(flops), transcendentals=0,
        bytes_accessed=int(weight_bytes + n_pad * (2 * (d + c + 9) + 2 * h2p)))

    out = _run_pallas(
        _entity_kernel,
        jax.ShapeDtypeStruct((n_pad, h2p), jnp.bfloat16),
        (n_pad // tile,),
        [_row_spec(tile, d), _row_spec(tile, c), _row_spec(tile, 9)],
        _row_spec(tile, h2p),
        rows, weights, cost, vmem_limit)
    return out[:n, :h2]


# --------------------------------------------------------------------------- #
# Fused relation-side kernel
#   pair_bbox_geo_embed : ReLU(geo32 @ W1' + b1')  (BN folded), then Linear(h,2h)
#                         with its 2h output columns split head/tail
#   ent_pair_fuse_fc    : LeakyReLU(pair * geo) @ W(2h,h)  (W row-split head/tail)
#   union_fuse_fc       : LeakyReLU(rel) @ W + b, + residual
#   output_fc           : LeakyReLU(u) @ W_out  -> lane-padded (tile, out_pad)
# --------------------------------------------------------------------------- #

def _relation_kernel(head_ref, tail_ref, geo32_ref, rel_ref,
                     gw1, gb1, gw2h, gw2t, gb2h, gb2t,
                     pfwh, pfwt, pfb, unw, unb, ow, ob, o_ref):
    f32, bf16 = jnp.float32, jnp.bfloat16
    gh = jnp.maximum(
        jnp.dot(geo32_ref[...], gw1[...], preferred_element_type=f32) + gb1[...], 0.0)
    gh_b = gh.astype(bf16)
    geo_h = jnp.dot(gh_b, gw2h[...], preferred_element_type=f32) + gb2h[...]
    geo_t = jnp.dot(gh_b, gw2t[...], preferred_element_type=f32) + gb2t[...]
    # ent_pair_fuse_fc: LeakyReLU([head, tail] * geo) @ W(2H,H) + b  (W split row-wise)
    xh = _lrelu_bf16(head_ref[...].astype(f32) * geo_h)
    xt = _lrelu_bf16(tail_ref[...].astype(f32) * geo_t)
    fused = (jnp.dot(xh, pfwh[...], preferred_element_type=f32)
             + jnp.dot(xt, pfwt[...], preferred_element_type=f32)
             + pfb[...])
    # union_fuse_fc(rel_features) + residual
    u = (jnp.dot(_lrelu_bf16(rel_ref[...]), unw[...], preferred_element_type=f32)
         + unb[...] + fused)
    # output_fc
    o_ref[...] = (jnp.dot(_lrelu_bf16(u), ow[...], preferred_element_type=f32)
                  + ob[...]).astype(o_ref.dtype)


def relation_fused(kp, head_g, tail_g, pair_geo32, rel_cat):
    n = head_g.shape[0]
    o, op = kp['out_size'], kp['out_pad']
    if n == 0:
        return jnp.zeros((0, o), jnp.float32)

    h = kp['pairfuse_b'].shape[1]
    vmem_limit, max_tile = _hw_tuning()
    tile = _choose_tile(n, max_tile)
    n_pad = _round_up(n, tile)

    rows = [_pad_rows(head_g, n_pad).astype(jnp.bfloat16),
            _pad_rows(tail_g, n_pad).astype(jnp.bfloat16),
            _pad_rows(pair_geo32, n_pad).astype(jnp.bfloat16),
            _pad_rows(rel_cat, n_pad).astype(jnp.bfloat16)]
    weights = [kp['geo_w1'], kp['geo_b1'], kp['geo_w2_h'], kp['geo_w2_t'],
               kp['geo_b2_h'], kp['geo_b2_t'],
               kp['pairfuse_w_h'], kp['pairfuse_w_t'], kp['pairfuse_b'],
               kp['union_w'], kp['union_b'], kp['out_w'], kp['out_b']]

    weight_bytes = sum(int(w.size) * w.dtype.itemsize for w in weights)
    flops = 2 * n_pad * (32 * h + 2 * h * h + 2 * h * h + o * h + h * op)
    cost = pl.CostEstimate(
        flops=int(flops), transcendentals=0,
        bytes_accessed=int(weight_bytes + n_pad * (2 * (2 * h + 32 + o) + 4 * op)))

    out = _run_pallas(
        _relation_kernel,
        jax.ShapeDtypeStruct((n_pad, op), jnp.float32),
        (n_pad // tile,),
        [_row_spec(tile, h), _row_spec(tile, h), _row_spec(tile, 32), _row_spec(tile, o)],
        _row_spec(tile, op),
        rows, weights, cost, vmem_limit)
    return out[:n, :o]


# --------------------------------------------------------------------------- #
# Plain-JAX glue: box geometry, batched gathers, splits
# --------------------------------------------------------------------------- #

def encode_box_info(boxes_list, image_sizes):
    # Motifs encode_box_info; image_sizes entries are (width, height) — this
    # ordering must match whatever the upstream proposal.image_size provides.
    feats = []
    for boxes, (wid, hei) in zip(boxes_list, image_sizes):
        wid, hei = float(wid), float(hei)
        wh = boxes[:, 2:4] - boxes[:, 0:2] + 1.0
        xy = boxes[:, 0:2] + 0.5 * wh
        w, h = wh[:, 0:1], wh[:, 1:2]
        x, y = xy[:, 0:1], xy[:, 1:2]
        x1, y1, x2, y2 = boxes[:, 0:1], boxes[:, 1:2], boxes[:, 2:3], boxes[:, 3:4]
        info = jnp.concatenate(
            [w / wid, h / hei, x / wid, y / hei, x1 / wid, y1 / hei, x2 / wid, y2 / hei,
             w * h / (wid * hei)], axis=-1)
        feats.append(info)
    return jnp.concatenate(feats, axis=0)


def get_box_info(boxes):
    # [x1,y1,x2,y2] -> [x1,y1,x2,y2,cx,cy,w,h]  (need_norm=False path)
    wh = boxes[:, 2:4] - boxes[:, 0:2] + 1.0
    center = boxes[:, 0:2] + 0.5 * wh
    return jnp.concatenate([boxes, center, wh], axis=1)


def get_box_pair_info(box1, box2):
    # (N,4)x2 -> (N,32) = [info(box1), info(box2), union, intersection]
    union = jnp.stack([jnp.minimum(box1[:, 0], box2[:, 0]),
                       jnp.minimum(box1[:, 1], box2[:, 1]),
                       jnp.maximum(box1[:, 2], box2[:, 2]),
                       jnp.maximum(box1[:, 3], box2[:, 3])], axis=1)
    inter = jnp.stack([jnp.maximum(box1[:, 0], box2[:, 0]),
                       jnp.maximum(box1[:, 1], box2[:, 1]),
                       jnp.minimum(box1[:, 2], box2[:, 2]),
                       jnp.minimum(box1[:, 3], box2[:, 3])], axis=1)
    inter_info = get_box_info(inter)
    invalid = (inter[:, 2] < inter[:, 0]) | (inter[:, 3] < inter[:, 1])
    inter_info = jnp.where(invalid[:, None], 0.0, inter_info)
    return jnp.concatenate([get_box_info(box1), get_box_info(box2),
                            get_box_info(union), inter_info], axis=1)


def split_by(x, sizes):
    out, off = [], 0
    for s in sizes:
        out.append(x[off:off + s])
        off += s
    return out


# --------------------------------------------------------------------------- #
# Parameters: raw (module-layout) init + host-side fold / bf16 / lane-pad prep
# --------------------------------------------------------------------------- #

def init_params(key, *, num_obj_classes, ent_word_dim, ent_input_dim, hidden,
                geo_dim, out_size):
    keys = iter(jax.random.split(key, 40))

    def nrm(shape, scale=0.05):
        return scale * jax.random.normal(next(keys), shape, dtype=jnp.float32)

    def bn(dim):
        gamma = 1.0 + 0.1 * jax.random.normal(next(keys), (dim,), dtype=jnp.float32)
        beta = 0.1 * jax.random.normal(next(keys), (dim,), dtype=jnp.float32)
        running_mean = 0.1 * jax.random.normal(next(keys), (dim,), dtype=jnp.float32)
        running_var = 0.5 + jnp.abs(jax.random.normal(next(keys), (dim,), dtype=jnp.float32))
        scale = gamma / jnp.sqrt(running_var + BN_EPS)
        shift = beta - running_mean * scale
        return scale, shift

    p = {}
    p['obj_embed_w'] = nrm((num_obj_classes, ent_word_dim), 0.1)      # nn.Embedding.weight
    # pos_embed: Linear(9,32) -> BN(32) -> Linear(32, geo_dim) -> ReLU
    p['pos_w1'], p['pos_b1'] = nrm((9, 32)), nrm((32,))
    p['pos_bn_scale'], p['pos_bn_shift'] = bn(32)
    p['pos_w2'], p['pos_b2'] = nrm((32, geo_dim)), nrm((geo_dim,))
    # ent4rel_hidden_fc: LeakyReLU -> Linear(ent_input + word + geo, hidden)
    p['hid_w_ent'] = nrm((ent_input_dim, hidden))
    p['hid_w_word'] = nrm((ent_word_dim, hidden))
    p['hid_w_pos'] = nrm((geo_dim, hidden))
    p['hid_b'] = nrm((hidden,))
    # pairwise_obj_feat_updim_fc: LeakyReLU -> Linear(hidden, 2*hidden)
    p['updim_w'], p['updim_b'] = nrm((hidden, 2 * hidden)), nrm((2 * hidden,))
    # pair_bbox_geo_embed: Linear(32,h) -> BN(h) -> ReLU -> Linear(h, 2h)
    p['geo_w1'], p['geo_b1'] = nrm((32, hidden)), nrm((hidden,))
    p['geo_bn_scale'], p['geo_bn_shift'] = bn(hidden)
    p['geo_w2'], p['geo_b2'] = nrm((hidden, 2 * hidden)), nrm((2 * hidden,))
    # ent_pair_fuse_fc: LeakyReLU -> Linear(2h, h)
    p['pairfuse_w'], p['pairfuse_b'] = nrm((2 * hidden, hidden)), nrm((hidden,))
    # union_fuse_fc: LeakyReLU -> Linear(out_size, h)
    p['union_w'], p['union_b'] = nrm((out_size, hidden)), nrm((hidden,))
    # output_fc: LeakyReLU -> Linear(h, out_size)
    p['out_w'], p['out_b'] = nrm((hidden, out_size)), nrm((out_size,))
    return p


def prepare_params(raw, hidden):
    """Host-side fold of affine BNs / pos_embed, bf16 weight cast, lane padding."""
    wq = lambda x: x.astype(jnp.bfloat16)                # MXU operand
    bq = lambda x: x.reshape(1, -1).astype(jnp.float32)  # bias added to f32 accumulator

    p = {}
    # --- entity side ---
    s, t = raw['pos_bn_scale'], raw['pos_bn_shift']
    pos_w = (raw['pos_w1'] * s[None, :]) @ raw['pos_w2']           # Linear+BN+Linear fold
    pos_b = (raw['pos_b1'] * s + t) @ raw['pos_w2'] + raw['pos_b2']
    p['pos_w'], p['pos_b'] = wq(pos_w), bq(pos_b)
    p['emb_w'] = wq(raw['obj_embed_w'])
    p['hid_w_ent'], p['hid_w_word'] = wq(raw['hid_w_ent']), wq(raw['hid_w_word'])
    p['hid_w_pos'], p['hid_b'] = wq(raw['hid_w_pos']), bq(raw['hid_b'])
    h2 = 2 * hidden
    h2p = _round_up(h2, LANE)                                       # lane-dense output
    uw, ub = raw['updim_w'], raw['updim_b']
    if h2p != h2:
        uw = jnp.pad(uw, ((0, 0), (0, h2p - h2)))
        ub = jnp.pad(ub, ((0, h2p - h2),))
    p['updim_w'], p['updim_b'] = wq(uw), bq(ub)
    p['h2'], p['h2_pad'] = h2, h2p

    # --- relation side ---
    gs, gt = raw['geo_bn_scale'], raw['geo_bn_shift']
    p['geo_w1'] = wq(raw['geo_w1'] * gs[None, :])                   # BN fold
    p['geo_b1'] = bq(raw['geo_b1'] * gs + gt)
    p['geo_w2_h'], p['geo_w2_t'] = wq(raw['geo_w2'][:, :hidden]), wq(raw['geo_w2'][:, hidden:])
    p['geo_b2_h'], p['geo_b2_t'] = bq(raw['geo_b2'][:hidden]), bq(raw['geo_b2'][hidden:])
    p['pairfuse_w_h'] = wq(raw['pairfuse_w'][:hidden])
    p['pairfuse_w_t'] = wq(raw['pairfuse_w'][hidden:])
    p['pairfuse_b'] = bq(raw['pairfuse_b'])
    p['union_w'], p['union_b'] = wq(raw['union_w']), bq(raw['union_b'])
    out_size = raw['out_w'].shape[1]
    op = _round_up(out_size, LANE)
    ow, ob = raw['out_w'], raw['out_b']
    if op != out_size:
        ow = jnp.pad(ow, ((0, 0), (0, op - out_size)))
        ob = jnp.pad(ob, ((0, op - out_size),))
    p['out_w'], p['out_b'] = wq(ow), bq(ob)
    p['out_size'], p['out_pad'] = out_size, op
    return p


# --------------------------------------------------------------------------- #
# Forward pass
# --------------------------------------------------------------------------- #

def pairwise_feature_extractor_forward(kp, rel_pair_idxs, ent_boxes, image_sizes,
                                       rel_features, ent_features, ent_pred_dists,
                                       hidden):
    ent_batch_sizes = [b.shape[0] for b in ent_boxes]
    rel_batch_sizes = [r.shape[0] for r in rel_pair_idxs]

    # per-image box encoding + concat (cheap elementwise glue)
    box_info9 = encode_box_info(ent_boxes, image_sizes)
    ent_features_cated = jnp.concatenate(ent_features, axis=0)
    ent_pred_dist = jnp.concatenate(ent_pred_dists, axis=0)

    # fused entity-side kernel -> bf16 (N_ent, 2H) head/tail slab
    fused = entity_fused(kp, ent_features_cated, ent_pred_dist, box_info9)
    head_rep = fused[:, :hidden]
    tail_rep = fused[:, hidden:]

    # one batched gather with globally offset pair indices (no per-image loop)
    # TODO(synk): for very large N_rel, gather head/tail rows inside the relation
    # kernel via PrefetchScalarGridSpec instead of jnp.take to save one HBM
    # roundtrip of the two (N_rel, H) temporaries.
    gidx, off = [], 0
    for pair_idx, n_e in zip(rel_pair_idxs, ent_batch_sizes):
        gidx.append(pair_idx + off)
        off += n_e
    gidx = jnp.concatenate(gidx, axis=0)
    boxes_all = jnp.concatenate(ent_boxes, axis=0)
    head_g = jnp.take(head_rep, gidx[:, 0], axis=0)
    tail_g = jnp.take(tail_rep, gidx[:, 1], axis=0)
    pair_geo32 = get_box_pair_info(jnp.take(boxes_all, gidx[:, 0], axis=0),
                                   jnp.take(boxes_all, gidx[:, 1], axis=0))
    rel_cat = jnp.concatenate(rel_features, axis=0)

    # fused relation-side kernel -> f32 (N_rel, out_size)
    out = relation_fused(kp, head_g, tail_g, pair_geo32, rel_cat)
    return split_by(out, rel_batch_sizes), ent_features


# --------------------------------------------------------------------------- #
# Main
# --------------------------------------------------------------------------- #

if __name__ == "__main__":
    NUM_IMAGES = 2
    NUM_ENT = 8            # entities per image
    NUM_REL = 8            # relation pairs per image
    NUM_OBJ_CLASSES = 16
    ENT_WORD_DIM = 32      # WORD_EMBEDDING_FEATURES_DIM
    ENT_INPUT_DIM = 64     # ent_feat_input_shape
    HIDDEN = 32            # PAIRWISE_REL_FEATURE.HIDDEN_DIM
    GEO_DIM = 256          # fixed by module (geometry_feat_dim)
    OUT_SIZE = 64          # rel_feat_input_shape / output_size
    IMAGE_SIZES = [(320.0, 240.0), (400.0, 300.0)]   # (width, height)

    key = jax.random.PRNGKey(0)
    kp_key, kd = jax.random.split(key)
    raw_params = init_params(kp_key, num_obj_classes=NUM_OBJ_CLASSES,
                             ent_word_dim=ENT_WORD_DIM, ent_input_dim=ENT_INPUT_DIM,
                             hidden=HIDDEN, geo_dim=GEO_DIM, out_size=OUT_SIZE)
    params = prepare_params(raw_params, HIDDEN)

    dkeys = jax.random.split(kd, NUM_IMAGES * 6)
    ent_features, rel_features, ent_boxes, ent_pred_dists, rel_pair_idxs = [], [], [], [], []
    for i in range(NUM_IMAGES):
        k0, k1, k2, k3, k4, k5 = dkeys[6 * i:6 * i + 6]
        wid, hei = IMAGE_SIZES[i]
        ent_features.append(jax.random.normal(k0, (NUM_ENT, ENT_INPUT_DIM), jnp.float32))
        rel_features.append(jax.random.normal(k1, (NUM_REL, OUT_SIZE), jnp.float32))
        xy1 = jax.random.uniform(k2, (NUM_ENT, 2), jnp.float32,
                                 minval=0.0, maxval=0.5) * jnp.array([wid, hei])
        wh = jax.random.uniform(k3, (NUM_ENT, 2), jnp.float32,
                                minval=0.1, maxval=0.5) * jnp.array([wid, hei])
        ent_boxes.append(jnp.concatenate([xy1, xy1 + wh], axis=1))
        ent_pred_dists.append(
            jax.nn.softmax(jax.random.normal(k4, (NUM_ENT, NUM_OBJ_CLASSES), jnp.float32), -1))
        rel_pair_idxs.append(
            jax.random.randint(k5, (NUM_REL, 2), 0, NUM_ENT, dtype=jnp.int32))

    rel_out, ent_out = pairwise_feature_extractor_forward(
        params, rel_pair_idxs, ent_boxes, IMAGE_SIZES,
        rel_features, ent_features, ent_pred_dists, HIDDEN)

    for r in rel_out:
        jax.block_until_ready(r)
    for e in ent_out:
        jax.block_until_ready(e)

    assert len(rel_out) == NUM_IMAGES
    assert all(r.shape == (NUM_REL, OUT_SIZE) for r in rel_out)
    assert all(bool(jnp.all(jnp.isfinite(r))) for r in rel_out)
    print("KERNEL_OK")
</pallas_src>

<mosaic_0001>
module attributes {stable_mosaic.version = 11 : i64} {
  func.func @_entity_kernel(%arg0: i32, %arg1: memref<16x64xbf16, #tpu.memory_space<vmem>>, %arg2: memref<16x16xbf16, #tpu.memory_space<vmem>>, %arg3: memref<16x9xbf16, #tpu.memory_space<vmem>>, %arg4: memref<9x256xbf16, #tpu.memory_space<vmem>>, %arg5: memref<1x256xf32, #tpu.memory_space<vmem>>, %arg6: memref<16x32xbf16, #tpu.memory_space<vmem>>, %arg7: memref<64x32xbf16, #tpu.memory_space<vmem>>, %arg8: memref<32x32xbf16, #tpu.memory_space<vmem>>, %arg9: memref<256x32xbf16, #tpu.memory_space<vmem>>, %arg10: memref<1x32xf32, #tpu.memory_space<vmem>>, %arg11: memref<32x128xbf16, #tpu.memory_space<vmem>>, %arg12: memref<1x128xf32, #tpu.memory_space<vmem>>, %arg13: memref<16x128xbf16, #tpu.memory_space<vmem>>) attributes {dimension_semantics = [#tpu.dimension_semantics<parallel>], iteration_bounds = array<i64: 1>, scalar_prefetch = 0 : i64, scratch_operands = 0 : i64, tpu.core_type = #tpu.core_type<tc>, window_params = [{transform_indices = @transform_0, window_bounds = array<i64: 16, 64>}, {transform_indices = @transform_1, window_bounds = array<i64: 16, 16>}, {transform_indices = @transform_2, window_bounds = array<i64: 16, 9>}, {pipeline_mode = #tpu.pipeline_mode<synchronous>, transform_indices = @transform_3, window_bounds = array<i64: 9, 256>}, {pipeline_mode = #tpu.pipeline_mode<synchronous>, transform_indices = @transform_4, window_bounds = array<i64: 1, 256>}, {pipeline_mode = #tpu.pipeline_mode<synchronous>, transform_indices = @transform_5, window_bounds = array<i64: 16, 32>}, {pipeline_mode = #tpu.pipeline_mode<synchronous>, transform_indices = @transform_6, window_bounds = array<i64: 64, 32>}, {pipeline_mode = #tpu.pipeline_mode<synchronous>, transform_indices = @transform_7, window_bounds = array<i64: 32, 32>}, {pipeline_mode = #tpu.pipeline_mode<synchronous>, transform_indices = @transform_8, window_bounds = array<i64: 256, 32>}, {pipeline_mode = #tpu.pipeline_mode<synchronous>, transform_indices = @transform_9, window_bounds = array<i64: 1, 32>}, {pipeline_mode = #tpu.pipeline_mode<synchronous>, transform_indices = @transform_10, window_bounds = array<i64: 32, 128>}, {pipeline_mode = #tpu.pipeline_mode<synchronous>, transform_indices = @transform_11, window_bounds = array<i64: 1, 128>}, {transform_indices = @transform_12, window_bounds = array<i64: 16, 128>}]} {
    %c0 = arith.constant 0 : index
    %c0_0 = arith.constant 0 : index
    %0 = vector.load %arg3[%c0, %c0_0] : memref<16x9xbf16, #tpu.memory_space<vmem>>, vector<16x9xbf16>
    %c0_1 = arith.constant 0 : index
    %c0_2 = arith.constant 0 : index
    %1 = vector.load %arg4[%c0_1, %c0_2] : memref<9x256xbf16, #tpu.memory_space<vmem>>, vector<9x256xbf16>
    %cst = arith.constant dense<0.000000e+00> : vector<16x256xf32>
    %2 = tpu.matmul %0, %1, %cst {dimension_numbers = #tpu.dot_dimension_numbers<[1], [0], [0], [1], [0, 0, 1, 1], [], []>} : vector<16x9xbf16>, vector<9x256xbf16>, vector<16x256xf32> -> vector<16x256xf32>
    %c0_3 = arith.constant 0 : index
    %c0_4 = arith.constant 0 : index
    %3 = vector.load %arg5[%c0_3, %c0_4] : memref<1x256xf32, #tpu.memory_space<vmem>>, vector<1x256xf32>
    %4 = vector.broadcast %3 : vector<1x256xf32> to vector<16x256xf32>
    %5 = arith.addf %2, %4 : vector<16x256xf32>
    %cst_5 = arith.constant 0.000000e+00 : f32
    %6 = vector.broadcast %cst_5 : f32 to vector<16x256xf32>
    %7 = arith.maximumf %5, %6 : vector<16x256xf32>
    %c0_6 = arith.constant 0 : index
    %c0_7 = arith.constant 0 : index
    %8 = vector.load %arg2[%c0_6, %c0_7] : memref<16x16xbf16, #tpu.memory_space<vmem>>, vector<16x16xbf16>
    %c0_8 = arith.constant 0 : index
    %c0_9 = arith.constant 0 : index
    %9 = vector.load %arg6[%c0_8, %c0_9] : memref<16x32xbf16, #tpu.memory_space<vmem>>, vector<16x32xbf16>
    %cst_10 = arith.constant dense<0.000000e+00> : vector<16x32xf32>
    %10 = tpu.matmul %8, %9, %cst_10 {dimension_numbers = #tpu.dot_dimension_numbers<[1], [0], [0], [1], [0, 0, 1, 1], [], []>} : vector<16x16xbf16>, vector<16x32xbf16>, vector<16x32xf32> -> vector<16x32xf32>
    %c0_11 = arith.constant 0 : index
    %c0_12 = arith.constant 0 : index
    %11 = vector.load %arg1[%c0_11, %c0_12] : memref<16x64xbf16, #tpu.memory_space<vmem>>, vector<16x64xbf16>
    %12 = arith.extf %11 : vector<16x64xbf16> to vector<16x64xf32>
    %cst_13 = arith.constant 0.000000e+00 : f32
    %13 = vector.broadcast %cst_13 : f32 to vector<16x64xf32>
    %14 = arith.cmpf oge, %12, %13 : vector<16x64xf32>
    %cst_14 = arith.constant 0.00999999977 : f32
    %15 = vector.broadcast %cst_14 : f32 to vector<16x64xf32>
    %16 = arith.mulf %15, %12 : vector<16x64xf32>
    %17 = arith.select %14, %12, %16 : vector<16x64xi1>, vector<16x64xf32>
    %18 = arith.truncf %17 : vector<16x64xf32> to vector<16x64xbf16>
    %c0_15 = arith.constant 0 : index
    %c0_16 = arith.constant 0 : index
    %19 = vector.load %arg7[%c0_15, %c0_16] : memref<64x32xbf16, #tpu.memory_space<vmem>>, vector<64x32xbf16>
    %cst_17 = arith.constant dense<0.000000e+00> : vector<16x32xf32>
    %20 = tpu.matmul %18, %19, %cst_17 {dimension_numbers = #tpu.dot_dimension_numbers<[1], [0], [0], [1], [0, 0, 1, 1], [], []>} : vector<16x64xbf16>, vector<64x32xbf16>, vector<16x32xf32> -> vector<16x32xf32>
    %cst_18 = arith.constant 0.000000e+00 : f32
    %21 = vector.broadcast %cst_18 : f32 to vector<16x32xf32>
    %22 = arith.cmpf oge, %10, %21 : vector<16x32xf32>
    %cst_19 = arith.constant 0.00999999977 : f32
    %23 = vector.broadcast %cst_19 : f32 to vector<16x32xf32>
    %24 = arith.mulf %23, %10 : vector<16x32xf32>
    %25 = arith.select %22, %10, %24 : vector<16x32xi1>, vector<16x32xf32>
    %26 = arith.truncf %25 : vector<16x32xf32> to vector<16x32xbf16>
    %c0_20 = arith.constant 0 : index
    %c0_21 = arith.constant 0 : index
    %27 = vector.load %arg8[%c0_20, %c0_21] : memref<32x32xbf16, #tpu.memory_space<vmem>>, vector<32x32xbf16>
    %cst_22 = arith.constant dense<0.000000e+00> : vector<16x32xf32>
    %28 = tpu.matmul %26, %27, %cst_22 {dimension_numbers = #tpu.dot_dimension_numbers<[1], [0], [0], [1], [0, 0, 1, 1], [], []>} : vector<16x32xbf16>, vector<32x32xbf16>, vector<16x32xf32> -> vector<16x32xf32>
    %29 = arith.addf %20, %28 : vector<16x32xf32>
    %30 = arith.truncf %7 : vector<16x256xf32> to vector<16x256xbf16>
    %c0_23 = arith.constant 0 : index
    %c0_24 = arith.constant 0 : index
    %31 = vector.load %arg9[%c0_23, %c0_24] : memref<256x32xbf16, #tpu.memory_space<vmem>>, vector<256x32xbf16>
    %cst_25 = arith.constant dense<0.000000e+00> : vector<16x32xf32>
    %32 = tpu.matmul %30, %31, %cst_25 {dimension_numbers = #tpu.dot_dimension_numbers<[1], [0], [0], [1], [0, 0, 1, 1], [], []>} : vector<16x256xbf16>, vector<256x32xbf16>, vector<16x32xf32> -> vector<16x32xf32>
    %33 = arith.addf %29, %32 : vector<16x32xf32>
    %c0_26 = arith.constant 0 : index
    %c0_27 = arith.constant 0 : index
    %34 = vector.load %arg10[%c0_26, %c0_27] : memref<1x32xf32, #tpu.memory_space<vmem>>, vector<1x32xf32>
    %35 = vector.broadcast %34 : vector<1x32xf32> to vector<16x32xf32>
    %36 = arith.addf %33, %35 : vector<16x32xf32>
    %cst_28 = arith.constant 0.000000e+00 : f32
    %37 = vector.broadcast %cst_28 : f32 to vector<16x32xf32>
    %38 = arith.cmpf oge, %36, %37 : vector<16x32xf32>
    %cst_29 = arith.constant 0.00999999977 : f32
    %39 = vector.broadcast %cst_29 : f32 to vector<16x32xf32>
    %40 = arith.mulf %39, %36 : vector<16x32xf32>
    %41 = arith.select %38, %36, %40 : vector<16x32xi1>, vector<16x32xf32>
    %42 = arith.truncf %41 : vector<16x32xf32> to vector<16x32xbf16>
    %c0_30 = arith.constant 0 : index
    %c0_31 = arith.constant 0 : index
    %43 = vector.load %arg11[%c0_30, %c0_31] : memref<32x128xbf16, #tpu.memory_space<vmem>>, vector<32x128xbf16>
    %cst_32 = arith.constant dense<0.000000e+00> : vector<16x128xf32>
    %44 = tpu.matmul %42, %43, %cst_32 {dimension_numbers = #tpu.dot_dimension_numbers<[1], [0], [0], [1], [0, 0, 1, 1], [], []>} : vector<16x32xbf16>, vector<32x128xbf16>, vector<16x128xf32> -> vector<16x128xf32>
    %c0_33 = arith.constant 0 : index
    %c0_34 = arith.constant 0 : index
    %45 = vector.load %arg12[%c0_33, %c0_34] : memref<1x128xf32, #tpu.memory_space<vmem>>, vector<1x128xf32>
    %46 = vector.broadcast %45 : vector<1x128xf32> to vector<16x128xf32>
    %47 = arith.addf %44, %46 : vector<16x128xf32>
    %48 = arith.truncf %47 : vector<16x128xf32> to vector<16x128xbf16>
    %c0_35 = arith.constant 0 : index
    %c0_36 = arith.constant 0 : index
    %49 = vector.load %arg13[%c0_35, %c0_36] : memref<16x128xbf16, #tpu.memory_space<vmem>>, vector<16x128xbf16>
    tpu.vector_store %arg13[%c0_35, %c0_36], %48 {strides = array<i32>} : memref<16x128xbf16, #tpu.memory_space<vmem>>, vector<16x128xbf16>,
    return
  }
  func.func @transform_0(%arg0: i32) -> (i32, i32) {
    %c0_i32 = arith.constant 0 : i32
    %c0_i32_0 = arith.constant 0 : i32
    return %arg0, %c0_i32 : i32, i32
  }
  func.func @transform_1(%arg0: i32) -> (i32, i32) {
    %c0_i32 = arith.constant 0 : i32
    %c0_i32_0 = arith.constant 0 : i32
    return %arg0, %c0_i32 : i32, i32
  }
  func.func @transform_2(%arg0: i32) -> (i32, i32) {
    %c0_i32 = arith.constant 0 : i32
    %c0_i32_0 = arith.constant 0 : i32
    return %arg0, %c0_i32 : i32, i32
  }
  func.func @transform_3(%arg0: i32) -> (i32, i32) {
    %c0_i32 = arith.constant 0 : i32
    %c0_i32_0 = arith.constant 0 : i32
    %c0_i32_1 = arith.constant 0 : i32
    return %c0_i32, %c0_i32_0 : i32, i32
  }
  func.func @transform_4(%arg0: i32) -> (i32, i32) {
    %c0_i32 = arith.constant 0 : i32
    %c0_i32_0 = arith.constant 0 : i32
    %c0_i32_1 = arith.constant 0 : i32
    return %c0_i32, %c0_i32_0 : i32, i32
  }
  func.func @transform_5(%arg0: i32) -> (i32, i32) {
    %c0_i32 = arith.constant 0 : i32
    %c0_i32_0 = arith.constant 0 : i32
    %c0_i32_1 = arith.constant 0 : i32
    return %c0_i32, %c0_i32_0 : i32, i32
  }
  func.func @transform_6(%arg0: i32) -> (i32, i32) {
    %c0_i32 = arith.constant 0 : i32
    %c0_i32_0 = arith.constant 0 : i32
    %c0_i32_1 = arith.constant 0 : i32
    return %c0_i32, %c0_i32_0 : i32, i32
  }
  func.func @transform_7(%arg0: i32) -> (i32, i32) {
    %c0_i32 = arith.constant 0 : i32
    %c0_i32_0 = arith.constant 0 : i32
    %c0_i32_1 = arith.constant 0 : i32
    return %c0_i32, %c0_i32_0 : i32, i32
  }
  func.func @transform_8(%arg0: i32) -> (i32, i32) {
    %c0_i32 = arith.constant 0 : i32
    %c0_i32_0 = arith.constant 0 : i32
    %c0_i32_1 = arith.constant 0 : i32
    return %c0_i32, %c0_i32_0 : i32, i32
  }
  func.func @transform_9(%arg0: i32) -> (i32, i32) {
    %c0_i32 = arith.constant 0 : i32
    %c0_i32_0 = arith.constant 0 : i32
    %c0_i32_1 = arith.constant 0 : i32
    return %c0_i32, %c0_i32_0 : i32, i32
  }
  func.func @transform_10(%arg0: i32) -> (i32, i32) {
    %c0_i32 = arith.constant 0 : i32
    %c0_i32_0 = arith.constant 0 : i32
    %c0_i32_1 = arith.constant 0 : i32
    return %c0_i32, %c0_i32_0 : i32, i32
  }
  func.func @transform_11(%arg0: i32) -> (i32, i32) {
    %c0_i32 = arith.constant 0 : i32
    %c0_i32_0 = arith.constant 0 : i32
    %c0_i32_1 = arith.constant 0 : i32
    return %c0_i32, %c0_i32_0 : i32, i32
  }
  func.func @transform_12(%arg0: i32) -> (i32, i32) {
    %c0_i32 = arith.constant 0 : i32
    %c0_i32_0 = arith.constant 0 : i32
    return %arg0, %c0_i32 : i32, i32
  }
}

module attributes {stable_mosaic.version = 11 : i64} {
  func.func @_entity_kernel(%arg0: i32, %arg1: memref<16x64xbf16, #tpu.memory_space<vmem>>, %arg2: memref<16x16xbf16, #tpu.memory_space<vmem>>, %arg3: memref<16x9xbf16, #tpu.memory_space<vmem>>, %arg4: memref<9x256xbf16, #tpu.memory_space<vmem>>, %arg5: memref<1x256xf32, #tpu.memory_space<vmem>>, %arg6: memref<16x32xbf16, #tpu.memory_space<vmem>>, %arg7: memref<64x32xbf16, #tpu.memory_space<vmem>>, %arg8: memref<32x32xbf16, #tpu.memory_space<vmem>>, %arg9: memref<256x32xbf16, #tpu.memory_space<vmem>>, %arg10: memref<1x32xf32, #tpu.memory_space<vmem>>, %arg11: memref<32x128xbf16, #tpu.memory_space<vmem>>, %arg12: memref<1x128xf32, #tpu.memory_space<vmem>>, %arg13: memref<16x128xbf16, #tpu.memory_space<vmem>>) attributes {dimension_semantics = [#tpu.dimension_semantics<parallel>], iteration_bounds = array<i64: 1>, scalar_prefetch = 0 : i64, scratch_operands = 0 : i64, tpu.core_type = #tpu.core_type<tc>, window_params = [{transform_indices = @transform_0, window_bounds = array<i64: 16, 64>}, {transform_indices = @transform_1, window_bounds = array<i64: 16, 16>}, {transform_indices = @transform_2, window_bounds = array<i64: 16, 9>}, {pipeline_mode = #tpu.pipeline_mode<synchronous>, transform_indices = @transform_3, window_bounds = array<i64: 9, 256>}, {pipeline_mode = #tpu.pipeline_mode<synchronous>, transform_indices = @transform_4, window_bounds = array<i64: 1, 256>}, {pipeline_mode = #tpu.pipeline_mode<synchronous>, transform_indices = @transform_5, window_bounds = array<i64: 16, 32>}, {pipeline_mode = #tpu.pipeline_mode<synchronous>, transform_indices = @transform_6, window_bounds = array<i64: 64, 32>}, {pipeline_mode = #tpu.pipeline_mode<synchronous>, transform_indices = @transform_7, window_bounds = array<i64: 32, 32>}, {pipeline_mode = #tpu.pipeline_mode<synchronous>, transform_indices = @transform_8, window_bounds = array<i64: 256, 32>}, {pipeline_mode = #tpu.pipeline_mode<synchronous>, transform_indices = @transform_9, window_bounds = array<i64: 1, 32>}, {pipeline_mode = #tpu.pipeline_mode<synchronous>, transform_indices = @transform_10, window_bounds = array<i64: 32, 128>}, {pipeline_mode = #tpu.pipeline_mode<synchronous>, transform_indices = @transform_11, window_bounds = array<i64: 1, 128>}, {transform_indices = @transform_12, window_bounds = array<i64: 16, 128>}]} {
    %c0 = arith.constant 0 : index
    %c0_0 = arith.constant 0 : index
    %0 = vector.load %arg3[%c0, %c0_0] : memref<16x9xbf16, #tpu.memory_space<vmem>>, vector<16x9xbf16>
    %c0_1 = arith.constant 0 : index
    %c0_2 = arith.constant 0 : index
    %1 = vector.load %arg4[%c0_1, %c0_2] : memref<9x256xbf16, #tpu.memory_space<vmem>>, vector<9x256xbf16>
    %cst = arith.constant dense<0.000000e+00> : vector<16x256xf32>
    %2 = tpu.matmul %0, %1, %cst {dimension_numbers = #tpu.dot_dimension_numbers<[1], [0], [0], [1], [0, 0, 1, 1], [], []>} : vector<16x9xbf16>, vector<9x256xbf16>, vector<16x256xf32> -> vector<16x256xf32>
    %c0_3 = arith.constant 0 : index
    %c0_4 = arith.constant 0 : index
    %3 = vector.load %arg5[%c0_3, %c0_4] : memref<1x256xf32, #tpu.memory_space<vmem>>, vector<1x256xf32>
    %4 = vector.broadcast %3 : vector<1x256xf32> to vector<16x256xf32>
    %5 = arith.addf %2, %4 : vector<16x256xf32>
    %cst_5 = arith.constant 0.000000e+00 : f32
    %6 = vector.broadcast %cst_5 : f32 to vector<16x256xf32>
    %7 = arith.maximumf %5, %6 : vector<16x256xf32>
    %c0_6 = arith.constant 0 : index
    %c0_7 = arith.constant 0 : index
    %8 = vector.load %arg2[%c0_6, %c0_7] : memref<16x16xbf16, #tpu.memory_space<vmem>>, vector<16x16xbf16>
    %c0_8 = arith.constant 0 : index
    %c0_9 = arith.constant 0 : index
    %9 = vector.load %arg6[%c0_8, %c0_9] : memref<16x32xbf16, #tpu.memory_space<vmem>>, vector<16x32xbf16>
    %cst_10 = arith.constant dense<0.000000e+00> : vector<16x32xf32>
    %10 = tpu.matmul %8, %9, %cst_10 {dimension_numbers = #tpu.dot_dimension_numbers<[1], [0], [0], [1], [0, 0, 1, 1], [], []>} : vector<16x16xbf16>, vector<16x32xbf16>, vector<16x32xf32> -> vector<16x32xf32>
    %c0_11 = arith.constant 0 : index
    %c0_12 = arith.constant 0 : index
    %11 = vector.load %arg1[%c0_11, %c0_12] : memref<16x64xbf16, #tpu.memory_space<vmem>>, vector<16x64xbf16>
    %12 = arith.extf %11 : vector<16x64xbf16> to vector<16x64xf32>
    %cst_13 = arith.constant 0.000000e+00 : f32
    %13 = vector.broadcast %cst_13 : f32 to vector<16x64xf32>
    %14 = arith.cmpf oge, %12, %13 : vector<16x64xf32>
    %cst_14 = arith.constant 0.00999999977 : f32
    %15 = vector.broadcast %cst_14 : f32 to vector<16x64xf32>
    %16 = arith.mulf %15, %12 : vector<16x64xf32>
    %17 = arith.select %14, %12, %16 : vector<16x64xi1>, vector<16x64xf32>
    %18 = arith.truncf %17 : vector<16x64xf32> to vector<16x64xbf16>
    %c0_15 = arith.constant 0 : index
    %c0_16 = arith.constant 0 : index
    %19 = vector.load %arg7[%c0_15, %c0_16] : memref<64x32xbf16, #tpu.memory_space<vmem>>, vector<64x32xbf16>
    %cst_17 = arith.constant dense<0.000000e+00> : vector<16x32xf32>
    %20 = tpu.matmul %18, %19, %cst_17 {dimension_numbers = #tpu.dot_dimension_numbers<[1], [0], [0], [1], [0, 0, 1, 1], [], []>} : vector<16x64xbf16>, vector<64x32xbf16>, vector<16x32xf32> -> vector<16x32xf32>
    %cst_18 = arith.constant 0.000000e+00 : f32
    %21 = vector.broadcast %cst_18 : f32 to vector<16x32xf32>
    %22 = arith.cmpf oge, %10, %21 : vector<16x32xf32>
    %cst_19 = arith.constant 0.00999999977 : f32
    %23 = vector.broadcast %cst_19 : f32 to vector<16x32xf32>
    %24 = arith.mulf %23, %10 : vector<16x32xf32>
    %25 = arith.select %22, %10, %24 : vector<16x32xi1>, vector<16x32xf32>
    %26 = arith.truncf %25 : vector<16x32xf32> to vector<16x32xbf16>
    %c0_20 = arith.constant 0 : index
    %c0_21 = arith.constant 0 : index
    %27 = vector.load %arg8[%c0_20, %c0_21] : memref<32x32xbf16, #tpu.memory_space<vmem>>, vector<32x32xbf16>
    %cst_22 = arith.constant dense<0.000000e+00> : vector<16x32xf32>
    %28 = tpu.matmul %26, %27, %cst_22 {dimension_numbers = #tpu.dot_dimension_numbers<[1], [0], [0], [1], [0, 0, 1, 1], [], []>} : vector<16x32xbf16>, vector<32x32xbf16>, vector<16x32xf32> -> vector<16x32xf32>
    %29 = arith.addf %20, %28 : vector<16x32xf32>
    %30 = arith.truncf %7 : vector<16x256xf32> to vector<16x256xbf16>
    %c0_23 = arith.constant 0 : index
    %c0_24 = arith.constant 0 : index
    %31 = vector.load %arg9[%c0_23, %c0_24] : memref<256x32xbf16, #tpu.memory_space<vmem>>, vector<256x32xbf16>
    %cst_25 = arith.constant dense<0.000000e+00> : vector<16x32xf32>
    %32 = tpu.matmul %30, %31, %cst_25 {dimension_numbers = #tpu.dot_dimension_numbers<[1], [0], [0], [1], [0, 0, 1, 1], [], []>} : vector<16x256xbf16>, vector<256x32xbf16>, vector<16x32xf32> -> vector<16x32xf32>
    %33 = arith.addf %29, %32 : vector<16x32xf32>
    %c0_26 = arith.constant 0 : index
    %c0_27 = arith.constant 0 : index
    %34 = vector.load %arg10[%c0_26, %c0_27] : memref<1x32xf32, #tpu.memory_space<vmem>>, vector<1x32xf32>
    %35 = vector.broadcast %34 : vector<1x32xf32> to vector<16x32xf32>
    %36 = arith.addf %33, %35 : vector<16x32xf32>
    %cst_28 = arith.constant 0.000000e+00 : f32
    %37 = vector.broadcast %cst_28 : f32 to vector<16x32xf32>
    %38 = arith.cmpf oge, %36, %37 : vector<16x32xf32>
    %cst_29 = arith.constant 0.00999999977 : f32
    %39 = vector.broadcast %cst_29 : f32 to vector<16x32xf32>
    %40 = arith.mulf %39, %36 : vector<16x32xf32>
    %41 = arith.select %38, %36, %40 : vector<16x32xi1>, vector<16x32xf32>
    %42 = arith.truncf %41 : vector<16x32xf32> to vector<16x32xbf16>
    %c0_30 = arith.constant 0 : index
    %c0_31 = arith.constant 0 : index
    %43 = vector.load %arg11[%c0_30, %c0_31] : memref<32x128xbf16, #tpu.memory_space<vmem>>, vector<32x128xbf16>
    %cst_32 = arith.constant dense<0.000000e+00> : vector<16x128xf32>
    %44 = tpu.matmul %42, %43, %cst_32 {dimension_numbers = #tpu.dot_dimension_numbers<[1], [0], [0], [1], [0, 0, 1, 1], [], []>} : vector<16x32xbf16>, vector<32x128xbf16>, vector<16x128xf32> -> vector<16x128xf32>
    %c0_33 = arith.constant 0 : index
    %c0_34 = arith.constant 0 : index
    %45 = vector.load %arg12[%c0_33, %c0_34] : memref<1x128xf32, #tpu.memory_space<vmem>>, vector<1x128xf32>
    %46 = vector.broadcast %45 : vector<1x128xf32> to vector<16x128xf32>
    %47 = arith.addf %44, %46 : vector<16x128xf32>
    %48 = arith.truncf %47 : vector<16x128xf32> to vector<16x128xbf16>
    %c0_35 = arith.constant 0 : index
    %c0_36 = arith.constant 0 : index
    %49 = vector.load %arg13[%c0_35, %c0_36] : memref<16x128xbf16, #tpu.memory_space<vmem>>, vector<16x128xbf16>
    tpu.vector_store %arg13[%c0_35, %c0_36], %48 {strides = array<i32>} : memref<16x128xbf16, #tpu.memory_space<vmem>>, vector<16x128xbf16>,
    return
  }
  func.func @transform_0(%arg0: i32) -> (i32, i32) {
    %c0_i32 = arith.constant 0 : i32
    %c0_i32_0 = arith.constant 0 : i32
    return %arg0, %c0_i32 : i32, i32
  }
  func.func @transform_1(%arg0: i32) -> (i32, i32) {
    %c0_i32 = arith.constant 0 : i32
    %c0_i32_0 = arith.constant 0 : i32
    return %arg0, %c0_i32 : i32, i32
  }
  func.func @transform_2(%arg0: i32) -> (i32, i32) {
    %c0_i32 = arith.constant 0 : i32
    %c0_i32_0 = arith.constant 0 : i32
    return %arg0, %c0_i32 : i32, i32
  }
  func.func @transform_3(%arg0: i32) -> (i32, i32) {
    %c0_i32 = arith.constant 0 : i32
    %c0_i32_0 = arith.constant 0 : i32
    %c0_i32_1 = arith.constant 0 : i32
    return %c0_i32, %c0_i32_0 : i32, i32
  }
  func.func @transform_4(%arg0: i32) -> (i32, i32) {
    %c0_i32 = arith.constant 0 : i32
    %c0_i32_0 = arith.constant 0 : i32
    %c0_i32_1 = arith.constant 0 : i32
    return %c0_i32, %c0_i32_0 : i32, i32
  }
  func.func @transform_5(%arg0: i32) -> (i32, i32) {
    %c0_i32 = arith.constant 0 : i32
    %c0_i32_0 = arith.constant 0 : i32
    %c0_i32_1 = arith.constant 0 : i32
    return %c0_i32, %c0_i32_0 : i32, i32
  }
  func.func @transform_6(%arg0: i32) -> (i32, i32) {
    %c0_i32 = arith.constant 0 : i32
    %c0_i32_0 = arith.constant 0 : i32
    %c0_i32_1 = arith.constant 0 : i32
    return %c0_i32, %c0_i32_0 : i32, i32
  }
  func.func @transform_7(%arg0: i32) -> (i32, i32) {
    %c0_i32 = arith.constant 0 : i32
    %c0_i32_0 = arith.constant 0 : i32
    %c0_i32_1 = arith.constant 0 : i32
    return %c0_i32, %c0_i32_0 : i32, i32
  }
  func.func @transform_8(%arg0: i32) -> (i32, i32) {
    %c0_i32 = arith.constant 0 : i32
    %c0_i32_0 = arith.constant 0 : i32
    %c0_i32_1 = arith.constant 0 : i32
    return %c0_i32, %c0_i32_0 : i32, i32
  }
  func.func @transform_9(%arg0: i32) -> (i32, i32) {
    %c0_i32 = arith.constant 0 : i32
    %c0_i32_0 = arith.constant 0 : i32
    %c0_i32_1 = arith.constant 0 : i32
    return %c0_i32, %c0_i32_0 : i32, i32
  }
  func.func @transform_10(%arg0: i32) -> (i32, i32) {
    %c0_i32 = arith.constant 0 : i32
    %c0_i32_0 = arith.constant 0 : i32
    %c0_i32_1 = arith.constant 0 : i32
    return %c0_i32, %c0_i32_0 : i32, i32
  }
  func.func @transform_11(%arg0: i32) -> (i32, i32) {
    %c0_i32 = arith.constant 0 : i32
    %c0_i32_0 = arith.constant 0 : i32
    %c0_i32_1 = arith.constant 0 : i32
    return %c0_i32, %c0_i32_0 : i32, i32
  }
  func.func @transform_12(%arg0: i32) -> (i32, i32) {
    %c0_i32 = arith.constant 0 : i32
    %c0_i32_0 = arith.constant 0 : i32
    return %arg0, %c0_i32 : i32, i32
  }
}

</mosaic_0001>

<llo_original>
// kernel: tpu_custom_call.1
$region0: #{tpu_custom_call.1}
  #allocation0 [shape = 'u32[]', space=smem, size = 0x4, offset = 0x4, fixed_abs, tag = 'smem constant byte address 0x4 - core index']
  #allocation1 [shape = 'u32[72,128]{1,0:T(1,128)}', space=vmem, size = 0x9000, scoped, tag = 'internal scratch']
  %s0 = inlined_call_operand.vmem [shape: bf16[16,64], index: 0, kind: input, shape index: {}]
  %s1 = inlined_call_operand.vmem [shape: bf16[16,16], index: 1, kind: input, shape index: {}]
  %s2 = inlined_call_operand.vmem [shape: bf16[16,9], index: 2, kind: input, shape index: {}]
  %s3 = inlined_call_operand.vmem [shape: bf16[9,256], index: 3, kind: input, shape index: {}]
  %s4 = inlined_call_operand.vmem [shape: f32[1,256], index: 4, kind: input, shape index: {}]
  %s5 = inlined_call_operand.vmem [shape: bf16[16,32], index: 5, kind: input, shape index: {}]
  %s6 = inlined_call_operand.vmem [shape: bf16[64,32], index: 6, kind: input, shape index: {}]
  %s7 = inlined_call_operand.vmem [shape: bf16[32,32], index: 7, kind: input, shape index: {}]
  %s8 = inlined_call_operand.vmem [shape: bf16[256,32], index: 8, kind: input, shape index: {}]
  %s9 = inlined_call_operand.vmem [shape: f32[1,32], index: 9, kind: input, shape index: {}]
  %s10 = inlined_call_operand.vmem [shape: bf16[32,128], index: 10, kind: input, shape index: {}]
  %s11 = inlined_call_operand.vmem [shape: f32[1,128], index: 11, kind: input, shape index: {}]
  %s12 = inlined_call_operand.hbm [shape: bf16[16,128], index: 12, kind: output, shape index: {}]
  %s13 = sld [smem:[#allocation0]]
  $region58: #{tpu_custom_call.1} parent=0
    _
  %s15 = ssub.s32 1, %s13
  %s16 = scalar_select 0, %s15, %s13
  $region1: #{tpu_custom_call.1} parent=0
    #allocation2 [shape = 'u8[4096]{0}', space=vmem, size = 0x1000, scoped, tag = 'output window, operand 0, single buffered']
    #allocation3 [shape = 's32[1]{0}', space=sflag, size = 0x4, scoped, tag = 'scoped memory for tpu_custom_call.1']
    %17 = vsyncpa [#allocation3], 0
    // Predicated region
    $region2: #{tpu_custom_call.1} parent=1 // pred_check
      _
    $region3: #{tpu_custom_call.1} parent=1 // pred_check_branch
      %19 = sbr.rel (0) target = $region5
    $region4: #{tpu_custom_call.1} parent=1 // pred_region
      _
    $region5: #{tpu_custom_call.1} parent=1 // pred_fallthru
      _
    // Predicated region
    $region6: #{tpu_custom_call.1} parent=1 // pred_check
      _
    $region7: #{tpu_custom_call.1} parent=1 // pred_check_branch
      %21 = sbr.rel (0) target = $region9
    $region8: #{tpu_custom_call.1} parent=1 // pred_region
      _
    $region9: #{tpu_custom_call.1} parent=1 // pred_fallthru
      _
    // Predicated region
    $region10: #{tpu_custom_call.1} parent=1 // pred_check
      _
    $region11: #{tpu_custom_call.1} parent=1 // pred_check_branch
      %23 = sbr.rel (0) target = $region13
    $region12: #{tpu_custom_call.1} parent=1 // pred_region
      _
    $region13: #{tpu_custom_call.1} parent=1 // pred_fallthru
      _
    // Predicated region
    $region14: #{tpu_custom_call.1} parent=1 // pred_check
      _
    $region15: #{tpu_custom_call.1} parent=1 // pred_check_branch
      %25 = sbr.rel (0) target = $region17
    $region16: #{tpu_custom_call.1} parent=1 // pred_region
      _
    $region17: #{tpu_custom_call.1} parent=1 // pred_fallthru
      _
    // Predicated region
    $region18: #{tpu_custom_call.1} parent=1 // pred_check
      _
    $region19: #{tpu_custom_call.1} parent=1 // pred_check_branch
      %27 = sbr.rel (0) target = $region21
    $region20: #{tpu_custom_call.1} parent=1 // pred_region
      _
    $region21: #{tpu_custom_call.1} parent=1 // pred_fallthru
      _
    // Predicated region
    $region22: #{tpu_custom_call.1} parent=1 // pred_check
      _
    $region23: #{tpu_custom_call.1} parent=1 // pred_check_branch
      %29 = sbr.rel (0) target = $region25
    $region24: #{tpu_custom_call.1} parent=1 // pred_region
      _
    $region25: #{tpu_custom_call.1} parent=1 // pred_fallthru
      _
    // Predicated region
    $region26: #{tpu_custom_call.1} parent=1 // pred_check
      _
    $region27: #{tpu_custom_call.1} parent=1 // pred_check_branch
      %31 = sbr.rel (0) target = $region29
    $region28: #{tpu_custom_call.1} parent=1 // pred_region
      _
    $region29: #{tpu_custom_call.1} parent=1 // pred_fallthru
      _
    // Predicated region
    $region30: #{tpu_custom_call.1} parent=1 // pred_check
      _
    $region31: #{tpu_custom_call.1} parent=1 // pred_check_branch
      %33 = sbr.rel (0) target = $region33
    $region32: #{tpu_custom_call.1} parent=1 // pred_region
      _
    $region33: #{tpu_custom_call.1} parent=1 // pred_fallthru
      _
    // Predicated region
    $region34: #{tpu_custom_call.1} parent=1 // pred_check
      _
    $region35: #{tpu_custom_call.1} parent=1 // pred_check_branch
      %35 = sbr.rel (0) target = $region37
    $region36: #{tpu_custom_call.1} parent=1 // pred_region
      _
    $region37: #{tpu_custom_call.1} parent=1 // pred_fallthru
      _
    // Predicated region
    $region38: #{tpu_custom_call.1} parent=1 // pred_check
      _
    $region39: #{tpu_custom_call.1} parent=1 // pred_check_branch
      %37 = sbr.rel (0) target = $region41
    $region40: #{tpu_custom_call.1} parent=1 // pred_region
      _
    $region41: #{tpu_custom_call.1} parent=1 // pred_fallthru
      _
    // Predicated region
    $region42: #{tpu_custom_call.1} parent=1 // pred_check
      _
    $region43: #{tpu_custom_call.1} parent=1 // pred_check_branch
      %39 = sbr.rel (0) target = $region45
    $region44: #{tpu_custom_call.1} parent=1 // pred_region
      _
    $region45: #{tpu_custom_call.1} parent=1 // pred_fallthru
      _
    // Predicated region
    $region46: #{tpu_custom_call.1} parent=1 // pred_check
      _
    $region47: #{tpu_custom_call.1} parent=1 // pred_check_branch
      %41 = sbr.rel (0) target = $region49
    $region48: #{tpu_custom_call.1} parent=1 // pred_region
      _
    $region49: #{tpu_custom_call.1} parent=1 // pred_fallthru
      _
    %v43 = vld [vmem:[%s2] sm:$0xf]
    %v44 = vld [vmem:[%s2 + $0x4] sm:$0xf]
    %v45 = vld [vmem:[%s3] sm:$0xff]
    %v46 = vld [vmem:[%s3 + $0x8] sm:$0x11]
    %v47 = vld [vmem:[%s4] sm:$0x3]
    %v49 = vperm.slane %v47, 0
    %v50 = vperm.slane %v47, 1
    %v55 = vunpack.c.l.b16 %v43
    %v56 = vunpack.c.l.b16 %v44
    %v57 = vpack.c.b16 %v56, %v55
    %v60 = vunpack.c.l.b16 %v45
    %v61 = vunpack.c.h.b16 %v45
    %v62 = vunpack.c.l.b16 %v46
    %v63 = vunpack.c.h.b16 %v46
    %v64 = vpack.c.b16 %v62, %v60
    %v65 = vpack.c.b16 %v63, %v61
    %vm66 = vcmask 72704
    %v68 = vsel %vm66, %v57, 0
    %vm70 = vcmask 1043456
    %vm71 = vcmask 1044480
    %v72 = vsel %vm70, 4294967295, 65535
    %v73 = vsel %vm71, %v72, 0
    %v75 = vand.u32 %v64, %v73
    %v78 = vand.u32 %v65, %v73
    %80 = vmatpush.bf16.msra.mxu0 0
    %81 = vmatpush.bf16.msra.mxu0 0
    %82 = vmatpush.bf16.msra.mxu0 0
    %83 = vmatpush.bf16.msra.mxu0 0
    %84 = vmatpush.bf16.msra.mxu0 0
    %85 = vmatpush.bf16.msra.mxu0 0
    %86 = vmatpush.bf16.msra.mxu0 0
    %87 = vmatpush.bf16.msra.mxu0 %v75
    %88 = vmatmul.bf16.gmra.mxu0 %v68
    %v89 = vpop.f32.mrf.mxu0
    %v90 = vadd.f32 %v49, %v89
    %v91 = vpop.f32.mrf.mxu0
    %v92 = vadd.f32 %v49, %v91
    %93 = vdwg.mxu0
    %94 = vmatpush.bf16.msra.mxu0 0
    %95 = vmatpush.bf16.msra.mxu0 0
    %96 = vmatpush.bf16.msra.mxu0 0
    %97 = vmatpush.bf16.msra.mxu0 0
    %98 = vmatpush.bf16.msra.mxu0 0
    %99 = vmatpush.bf16.msra.mxu0 0
    %100 = vmatpush.bf16.msra.mxu0 0
    %101 = vmatpush.bf16.msra.mxu0 %v78
    %102 = vmatmul.bf16.gmra.mxu0 %v68
    %v103 = vpop.f32.mrf.mxu0
    %v104 = vadd.f32 %v50, %v103
    %v105 = vpop.f32.mrf.mxu0
    %v106 = vadd.f32 %v50, %v105
    %107 = vdwg.mxu0
    %v108 = vmax.f32 %v90, 0.0
    %v109 = vmax.f32 %v104, 0.0
    %v110 = vmax.f32 %v92, 0.0
    %v111 = vmax.f32 %v106, 0.0
    %v112 = vld [vmem:[%s1] sm:$0xf]
    %v113 = vld [vmem:[%s1 + $0x4] sm:$0xf]
    %v114 = vld [vmem:[%s5] sm:$0xf]
    %v115 = vld [vmem:[%s5 + $0x4] sm:$0xf]
    %v118 = vunpack.c.l.b16 %v112
    %v119 = vunpack.c.l.b16 %v113
    %v120 = vpack.c.b16 %v119, %v118
    %v123 = vunpack.c.l.b16 %v114
    %v124 = vunpack.c.l.b16 %v115
    %v125 = vpack.c.b16 %v124, %v123
    %vm127 = vcmask 130048
    %v129 = vsel %vm127, %v120, 0
    %131 = vmatpush.bf16.msra.mxu0 0
    %132 = vmatpush.bf16.msra.mxu0 0
    %133 = vmatpush.bf16.msra.mxu0 0
    %134 = vmatpush.bf16.msra.mxu0 0
    %135 = vmatpush.bf16.msra.mxu0 0
    %136 = vmatpush.bf16.msra.mxu0 0
    %137 = vmatpush.bf16.msra.mxu0 0
    %138 = vmatpush.bf16.msra.mxu0 %v125
    %139 = vmatmul.bf16.gmra.mxu0 %v129
    %v140 = vpop.f32.mrf.mxu0
    %v141 = vadd.f32 0.0, %v140
    %v142 = vpop.f32.mrf.mxu0
    %v143 = vadd.f32 0.0, %v142
    %144 = vdwg.mxu0
    %v145 = vld [vmem:[%s0] sm:$0xf]
    %v146 = vld [vmem:[%s0 + $0x4] sm:$0xf]
    %v147 = vunpack.c.l.bf16 %v145
    %v148 = vunpack.c.l.bf16 %v146
    %vm149 = vcmp.ge.f32.partialorder %v147, 0.0
    %vm150 = vcmp.ge.f32.partialorder %v148, 0.0
    %v151 = vmul.f32 %v147, 0.01
    %v152 = vmul.f32 %v148, 0.01
    %v153 = vsel %vm149, %v147, %v151
    %v154 = vsel %vm150, %v148, %v152
    %v155 = vpack.c.bf16 %v154, %v153
    %v156 = vld [vmem:[%s6] sm:$0xf]
    %v157 = vld [vmem:[%s6 + $0x4] sm:$0xf]
    %v158 = vld [vmem:[%s6 + $0x8] sm:$0xf]
    %v159 = vld [vmem:[%s6 + $0xc] sm:$0xf]
    %v160 = vld [vmem:[%s6 + $0x10] sm:$0xf]
    %v161 = vld [vmem:[%s6 + $0x14] sm:$0xf]
    %v162 = vld [vmem:[%s6 + $0x18] sm:$0xf]
    %v163 = vld [vmem:[%s6 + $0x1c] sm:$0xf]
    %vm164 = vcmp.ge.f32.partialorder %v141, 0.0
    %vm165 = vcmp.ge.f32.partialorder %v143, 0.0
    %v166 = vmul.f32 %v141, 0.01
    %v167 = vmul.f32 %v143, 0.01
    %v168 = vsel %vm164, %v141, %v166
    %v169 = vsel %vm165, %v143, %v167
    %v170 = vpack.c.bf16 %v169, %v168
    %v171 = vld [vmem:[%s7] sm:$0xf]
    %v172 = vld [vmem:[%s7 + $0x4] sm:$0xf]
    %v173 = vld [vmem:[%s7 + $0x8] sm:$0xf]
    %v174 = vld [vmem:[%s7 + $0xc] sm:$0xf]
    %v179 = vunpack.c.l.b16 %v171
    %v180 = vunpack.c.l.b16 %v172
    %v181 = vunpack.c.l.b16 %v173
    %v182 = vunpack.c.l.b16 %v174
    %v183 = vpack.c.b16 %v180, %v179
    %v184 = vpack.c.b16 %v182, %v181
    %vm187 = vcmask 261120
    %v189 = vsel %vm187, %v170, 0
    %191 = vmatpush.bf16.msra.mxu0 0
    %192 = vmatpush.bf16.msra.mxu0 0
    %193 = vmatpush.bf16.msra.mxu0 0
    %194 = vmatpush.bf16.msra.mxu0 0
    %195 = vmatpush.bf16.msra.mxu0 0
    %196 = vmatpush.bf16.msra.mxu0 0
    %197 = vmatpush.bf16.msra.mxu0 %v184
    %198 = vmatpush.bf16.msra.mxu0 %v183
    %199 = vmatmul.bf16.gmra.mxu0 %v189
    %v200 = vpop.f32.mrf.mxu0
    %v201 = vadd.f32 0.0, %v200
    %v202 = vpop.f32.mrf.mxu0
    %v203 = vadd.f32 0.0, %v202
    %204 = vdwg.mxu0
    %v213 = vunpack.c.l.b16 %v156
    %v214 = vunpack.c.l.b16 %v157
    %v215 = vunpack.c.l.b16 %v158
    %v216 = vunpack.c.l.b16 %v159
    %v217 = vunpack.c.l.b16 %v160
    %v218 = vunpack.c.l.b16 %v161
    %v219 = vunpack.c.l.b16 %v162
    %v220 = vunpack.c.l.b16 %v163
    %v221 = vpack.c.b16 %v214, %v213
    %v222 = vpack.c.b16 %v216, %v215
    %v223 = vpack.c.b16 %v218, %v217
    %v224 = vpack.c.b16 %v220, %v219
    %vm229 = vcmask 523264
    %v231 = vsel %vm229, %v155, 0
    %233 = vmatpush.bf16.msra.mxu0 0
    %234 = vmatpush.bf16.msra.mxu0 0
    %235 = vmatpush.bf16.msra.mxu0 0
    %236 = vmatpush.bf16.msra.mxu0 0
    %237 = vmatpush.bf16.msra.mxu0 %v224
    %238 = vmatpush.bf16.msra.mxu0 %v223
    %239 = vmatpush.bf16.msra.mxu0 %v222
    %240 = vmatpush.bf16.msra.mxu0 %v221
    %241 = vmatmul.bf16.gmra.mxu0 %v231
    %v242 = vpop.f32.mrf.mxu0
    %v243 = vadd.f32 %v201, %v242
    %v244 = vpop.f32.mrf.mxu0
    %v245 = vadd.f32 %v203, %v244
    %246 = vdwg.mxu0
    %v247 = vpack.c.bf16 %v110, %v108
    %v248 = vpack.c.bf16 %v111, %v109
    %v249 = vld [vmem:[%s8] sm:$0xf]
    %v250 = vld [vmem:[%s8 + $0x4] sm:$0xf]
    %v251 = vld [vmem:[%s8 + $0x8] sm:$0xf]
    %v252 = vld [vmem:[%s8 + $0xc] sm:$0xf]
    %v253 = vld [vmem:[%s8 + $0x10] sm:$0xf]
    %v254 = vld [vmem:[%s8 + $0x14] sm:$0xf]
    %v255 = vld [vmem:[%s8 + $0x18] sm:$0xf]
    %v256 = vld [vmem:[%s8 + $0x1c] sm:$0xf]
    %v257 = vld [vmem:[%s8 + $0x20] sm:$0xf]
    %v258 = vld [vmem:[%s8 + $0x24] sm:$0xf]
    %v259 = vld [vmem:[%s8 + $0x28] sm:$0xf]
    %v260 = vld [vmem:[%s8 + $0x2c] sm:$0xf]
    %v261 = vld [vmem:[%s8 + $0x30] sm:$0xf]
    %v262 = vld [vmem:[%s8 + $0x34] sm:$0xf]
    %v263 = vld [vmem:[%s8 + $0x38] sm:$0xf]
    %v264 = vld [vmem:[%s8 + $0x3c] sm:$0xf]
    %v265 = vld [vmem:[%s8 + $0x40] sm:$0xf]
    %v266 = vld [vmem:[%s8 + $0x44] sm:$0xf]
    %v267 = vld [vmem:[%s8 + $0x48] sm:$0xf]
    %v268 = vld [vmem:[%s8 + $0x4c] sm:$0xf]
    %v269 = vld [vmem:[%s8 + $0x50] sm:$0xf]
    %v270 = vld [vmem:[%s8 + $0x54] sm:$0xf]
    %v271 = vld [vmem:[%s8 + $0x58] sm:$0xf]
    %v272 = vld [vmem:[%s8 + $0x5c] sm:$0xf]
    %v273 = vld [vmem:[%s8 + $0x60] sm:$0xf]
    %v274 = vld [vmem:[%s8 + $0x64] sm:$0xf]
    %v275 = vld [vmem:[%s8 + $0x68] sm:$0xf]
    %v276 = vld [vmem:[%s8 + $0x6c] sm:$0xf]
    %v277 = vld [vmem:[%s8 + $0x70] sm:$0xf]
    %v278 = vld [vmem:[%s8 + $0x74] sm:$0xf]
    %v279 = vld [vmem:[%s8 + $0x78] sm:$0xf]
    %v280 = vld [vmem:[%s8 + $0x7c] sm:$0xf]
    %v313 = vunpack.c.l.b16 %v249
    %v314 = vunpack.c.l.b16 %v250
    %v315 = vunpack.c.l.b16 %v251
    %v316 = vunpack.c.l.b16 %v252
    %v317 = vunpack.c.l.b16 %v253
    %v318 = vunpack.c.l.b16 %v254
    %v319 = vunpack.c.l.b16 %v255
    %v320 = vunpack.c.l.b16 %v256
    %v321 = vunpack.c.l.b16 %v257
    %v322 = vunpack.c.l.b16 %v258
    %v323 = vunpack.c.l.b16 %v259
    %v324 = vunpack.c.l.b16 %v260
    %v325 = vunpack.c.l.b16 %v261
    %v326 = vunpack.c.l.b16 %v262
    %v327 = vunpack.c.l.b16 %v263
    %v328 = vunpack.c.l.b16 %v264
    %v329 = vunpack.c.l.b16 %v265
    %v330 = vunpack.c.l.b16 %v266
    %v331 = vunpack.c.l.b16 %v267
    %v332 = vunpack.c.l.b16 %v268
    %v333 = vunpack.c.l.b16 %v269
    %v334 = vunpack.c.l.b16 %v270
    %v335 = vunpack.c.l.b16 %v271
    %v336 = vunpack.c.l.b16 %v272
    %v337 = vunpack.c.l.b16 %v273
    %v338 = vunpack.c.l.b16 %v274
    %v339 = vunpack.c.l.b16 %v275
    %v340 = vunpack.c.l.b16 %v276
    %v341 = vunpack.c.l.b16 %v277
    %v342 = vunpack.c.l.b16 %v278
    %v343 = vunpack.c.l.b16 %v279
    %v344 = vunpack.c.l.b16 %v280
    %v345 = vpack.c.b16 %v314, %v313
    %v346 = vpack.c.b16 %v316, %v315
    %v347 = vpack.c.b16 %v318, %v317
    %v348 = vpack.c.b16 %v320, %v319
    %v349 = vpack.c.b16 %v322, %v321
    %v350 = vpack.c.b16 %v324, %v323
    %v351 = vpack.c.b16 %v326, %v325
    %v352 = vpack.c.b16 %v328, %v327
    %v353 = vpack.c.b16 %v330, %v329
    %v354 = vpack.c.b16 %v332, %v331
    %v355 = vpack.c.b16 %v334, %v333
    %v356 = vpack.c.b16 %v336, %v335
    %v357 = vpack.c.b16 %v338, %v337
    %v358 = vpack.c.b16 %v340, %v339
    %v359 = vpack.c.b16 %v342, %v341
    %v360 = vpack.c.b16 %v344, %v343
    %377 = vmatpush.bf16.msra.mxu0 %v352
    %378 = vmatpush.bf16.msra.mxu0 %v351
    %379 = vmatpush.bf16.msra.mxu0 %v350
    %380 = vmatpush.bf16.msra.mxu0 %v349
    %381 = vmatpush.bf16.msra.mxu0 %v348
    %382 = vmatpush.bf16.msra.mxu0 %v347
    %383 = vmatpush.bf16.msra.mxu0 %v346
    %384 = vmatpush.bf16.msra.mxu0 %v345
    %385 = vmatmul.bf16.gmra.mxu0 %v247
    %v386 = vpop.f32.mrf.mxu0
    %v387 = vadd.f32 0.0, %v386
    %v388 = vpop.f32.mrf.mxu0
    %v389 = vadd.f32 0.0, %v388
    %390 = vdwg.mxu0
    %391 = vmatpush.bf16.msra.mxu0 %v360
    %392 = vmatpush.bf16.msra.mxu0 %v359
    %393 = vmatpush.bf16.msra.mxu0 %v358
    %394 = vmatpush.bf16.msra.mxu0 %v357
    %395 = vmatpush.bf16.msra.mxu0 %v356
    %396 = vmatpush.bf16.msra.mxu0 %v355
    %397 = vmatpush.bf16.msra.mxu0 %v354
    %398 = vmatpush.bf16.msra.mxu0 %v353
    %399 = vmatmul.bf16.gmra.mxu0 %v248
    %v400 = vpop.f32.mrf.mxu0
    %v401 = vadd.f32 %v387, %v400
    %v402 = vpop.f32.mrf.mxu0
    %v403 = vadd.f32 %v389, %v402
    %404 = vdwg.mxu0
    %v405 = vadd.f32 %v243, %v401
    %v406 = vadd.f32 %v245, %v403
    %v407 = vld [vmem:[%s9] sm:$0x1]
    %v409 = vperm.slane %v407, 0
    %v411 = vadd.f32 %v405, %v409
    %v412 = vadd.f32 %v406, %v409
    %vm413 = vcmp.ge.f32.partialorder %v411, 0.0
    %vm414 = vcmp.ge.f32.partialorder %v412, 0.0
    %v415 = vmul.f32 %v411, 0.01
    %v416 = vmul.f32 %v412, 0.01
    %v417 = vsel %vm413, %v411, %v415
    %v418 = vsel %vm414, %v412, %v416
    %v419 = vpack.c.bf16 %v418, %v417
    %v420 = vld [vmem:[%s10] sm:$0xf]
    %v421 = vld [vmem:[%s10 + $0x4] sm:$0xf]
    %v422 = vld [vmem:[%s10 + $0x8] sm:$0xf]
    %v423 = vld [vmem:[%s10 + $0xc] sm:$0xf]
    %v424 = vld [vmem:[%s11] sm:$0x1]
    %v426 = vperm.slane %v424, 0
    %v432 = vunpack.c.l.b16 %v420
    %v433 = vunpack.c.l.b16 %v421
    %v434 = vunpack.c.l.b16 %v422
    %v435 = vunpack.c.l.b16 %v423
    %v436 = vpack.c.b16 %v433, %v432
    %v437 = vpack.c.b16 %v435, %v434
    %v441 = vsel %vm187, %v419, 0
    %443 = vmatpush.bf16.msra.mxu0 0
    %444 = vmatpush.bf16.msra.mxu0 0
    %445 = vmatpush.bf16.msra.mxu0 0
    %446 = vmatpush.bf16.msra.mxu0 0
    %447 = vmatpush.bf16.msra.mxu0 0
    %448 = vmatpush.bf16.msra.mxu0 0
    %449 = vmatpush.bf16.msra.mxu0 %v437
    %450 = vmatpush.bf16.msra.mxu0 %v436
    %451 = vmatmul.bf16.gmra.mxu0 %v441
    %v452 = vpop.f32.mrf.mxu0
    %v453 = vadd.f32 %v426, %v452
    %v454 = vpop.f32.mrf.mxu0
    %v455 = vadd.f32 %v426, %v454
    %456 = vdwg.mxu0
    %v457 = vpack.c.bf16 %v453, %v453
    %v458 = vpack.c.bf16 %v455, %v455
    %459 = vst [vmem:[#allocation2] sm:$0xf] %v457
    %460 = vst [vmem:[#allocation2 + $0x4] sm:$0xf] %v458
    // Predicated region
    $region50: #{tpu_custom_call.1} parent=1 // pred_check
      _
    $region51: #{tpu_custom_call.1} parent=1 // pred_check_branch
      %462 = sbr.rel (0) target = $region53
    $region52: #{tpu_custom_call.1} parent=1 // pred_region
      %464 = vsyncadd [#allocation3], 0
      %s465 = sshll.u32 [#allocation2], 4
      %s466 = int_to_ptr.vmem [resolvable:$true] %s465
      %s467 = sshll.u32 %s12, 4
      %s468 = int_to_ptr.hbm [resolvable:$true] %s467
      %473 = dma.vmem_to_hbm [thread:$0]  %s466, 128, %s468, [#allocation3], 64, 64, 4
    $region53: #{tpu_custom_call.1} parent=1 // pred_fallthru
      _
    // Predicated region
    $region54: #{tpu_custom_call.1} parent=1 // pred_check
      _
    $region55: #{tpu_custom_call.1} parent=1 // pred_check_branch
      %475 = sbr.rel (0) target = $region57
    $region56: #{tpu_custom_call.1} parent=1 // pred_region
      %477 = dma.done [#allocation3], 128
    $region57: #{tpu_custom_call.1} parent=1 // pred_fallthru
      _
    %478 = vsyncpa [#allocation3], 1

// kernel: tpu_custom_call.1
$region0: #{tpu_custom_call.1}
  #allocation0 [shape = 'u32[]', space=smem, size = 0x4, offset = 0x4, fixed_abs, tag = 'smem constant byte address 0x4 - core index']
  #allocation1 [shape = 'u32[72,128]{1,0:T(1,128)}', space=vmem, size = 0x9000, scoped, tag = 'internal scratch']
  %s0 = inlined_call_operand.vmem [shape: bf16[16,64], index: 0, kind: input, shape index: {}]
  %s1 = inlined_call_operand.vmem [shape: bf16[16,16], index: 1, kind: input, shape index: {}]
  %s2 = inlined_call_operand.vmem [shape: bf16[16,9], index: 2, kind: input, shape index: {}]
  %s3 = inlined_call_operand.vmem [shape: bf16[9,256], index: 3, kind: input, shape index: {}]
  %s4 = inlined_call_operand.vmem [shape: f32[1,256], index: 4, kind: input, shape index: {}]
  %s5 = inlined_call_operand.vmem [shape: bf16[16,32], index: 5, kind: input, shape index: {}]
  %s6 = inlined_call_operand.vmem [shape: bf16[64,32], index: 6, kind: input, shape index: {}]
  %s7 = inlined_call_operand.vmem [shape: bf16[32,32], index: 7, kind: input, shape index: {}]
  %s8 = inlined_call_operand.vmem [shape: bf16[256,32], index: 8, kind: input, shape index: {}]
  %s9 = inlined_call_operand.vmem [shape: f32[1,32], index: 9, kind: input, shape index: {}]
  %s10 = inlined_call_operand.vmem [shape: bf16[32,128], index: 10, kind: input, shape index: {}]
  %s11 = inlined_call_operand.vmem [shape: f32[1,128], index: 11, kind: input, shape index: {}]
  %s12 = inlined_call_operand.hbm [shape: bf16[16,128], index: 12, kind: output, shape index: {}]
  %s13 = sld [smem:[#allocation0]]
  $region58: #{tpu_custom_call.1} parent=0
    _
  %s15 = ssub.s32 1, %s13
  %s16 = scalar_select 0, %s15, %s13
  $region1: #{tpu_custom_call.1} parent=0
    #allocation2 [shape = 'u8[4096]{0}', space=vmem, size = 0x1000, scoped, tag = 'output window, operand 0, single buffered']
    #allocation3 [shape = 's32[1]{0}', space=sflag, size = 0x4, scoped, tag = 'scoped memory for tpu_custom_call.1']
    %17 = vsyncpa [#allocation3], 0
    // Predicated region
    $region2: #{tpu_custom_call.1} parent=1 // pred_check
      _
    $region3: #{tpu_custom_call.1} parent=1 // pred_check_branch
      %19 = sbr.rel (0) target = $region5
    $region4: #{tpu_custom_call.1} parent=1 // pred_region
      _
    $region5: #{tpu_custom_call.1} parent=1 // pred_fallthru
      _
    // Predicated region
    $region6: #{tpu_custom_call.1} parent=1 // pred_check
      _
    $region7: #{tpu_custom_call.1} parent=1 // pred_check_branch
      %21 = sbr.rel (0) target = $region9
    $region8: #{tpu_custom_call.1} parent=1 // pred_region
      _
    $region9: #{tpu_custom_call.1} parent=1 // pred_fallthru
      _
    // Predicated region
    $region10: #{tpu_custom_call.1} parent=1 // pred_check
      _
    $region11: #{tpu_custom_call.1} parent=1 // pred_check_branch
      %23 = sbr.rel (0) target = $region13
    $region12: #{tpu_custom_call.1} parent=1 // pred_region
      _
    $region13: #{tpu_custom_call.1} parent=1 // pred_fallthru
      _
    // Predicated region
    $region14: #{tpu_custom_call.1} parent=1 // pred_check
      _
    $region15: #{tpu_custom_call.1} parent=1 // pred_check_branch
      %25 = sbr.rel (0) target = $region17
    $region16: #{tpu_custom_call.1} parent=1 // pred_region
      _
    $region17: #{tpu_custom_call.1} parent=1 // pred_fallthru
      _
    // Predicated region
    $region18: #{tpu_custom_call.1} parent=1 // pred_check
      _
    $region19: #{tpu_custom_call.1} parent=1 // pred_check_branch
      %27 = sbr.rel (0) target = $region21
    $region20: #{tpu_custom_call.1} parent=1 // pred_region
      _
    $region21: #{tpu_custom_call.1} parent=1 // pred_fallthru
      _
    // Predicated region
    $region22: #{tpu_custom_call.1} parent=1 // pred_check
      _
    $region23: #{tpu_custom_call.1} parent=1 // pred_check_branch
      %29 = sbr.rel (0) target = $region25
    $region24: #{tpu_custom_call.1} parent=1 // pred_region
      _
    $region25: #{tpu_custom_call.1} parent=1 // pred_fallthru
      _
    // Predicated region
    $region26: #{tpu_custom_call.1} parent=1 // pred_check
      _
    $region27: #{tpu_custom_call.1} parent=1 // pred_check_branch
      %31 = sbr.rel (0) target = $region29
    $region28: #{tpu_custom_call.1} parent=1 // pred_region
      _
    $region29: #{tpu_custom_call.1} parent=1 // pred_fallthru
      _
    // Predicated region
    $region30: #{tpu_custom_call.1} parent=1 // pred_check
      _
    $region31: #{tpu_custom_call.1} parent=1 // pred_check_branch
      %33 = sbr.rel (0) target = $region33
    $region32: #{tpu_custom_call.1} parent=1 // pred_region
      _
    $region33: #{tpu_custom_call.1} parent=1 // pred_fallthru
      _
    // Predicated region
    $region34: #{tpu_custom_call.1} parent=1 // pred_check
      _
    $region35: #{tpu_custom_call.1} parent=1 // pred_check_branch
      %35 = sbr.rel (0) target = $region37
    $region36: #{tpu_custom_call.1} parent=1 // pred_region
      _
    $region37: #{tpu_custom_call.1} parent=1 // pred_fallthru
      _
    // Predicated region
    $region38: #{tpu_custom_call.1} parent=1 // pred_check
      _
    $region39: #{tpu_custom_call.1} parent=1 // pred_check_branch
      %37 = sbr.rel (0) target = $region41
    $region40: #{tpu_custom_call.1} parent=1 // pred_region
      _
    $region41: #{tpu_custom_call.1} parent=1 // pred_fallthru
      _
    // Predicated region
    $region42: #{tpu_custom_call.1} parent=1 // pred_check
      _
    $region43: #{tpu_custom_call.1} parent=1 // pred_check_branch
      %39 = sbr.rel (0) target = $region45
    $region44: #{tpu_custom_call.1} parent=1 // pred_region
      _
    $region45: #{tpu_custom_call.1} parent=1 // pred_fallthru
      _
    // Predicated region
    $region46: #{tpu_custom_call.1} parent=1 // pred_check
      _
    $region47: #{tpu_custom_call.1} parent=1 // pred_check_branch
      %41 = sbr.rel (0) target = $region49
    $region48: #{tpu_custom_call.1} parent=1 // pred_region
      _
    $region49: #{tpu_custom_call.1} parent=1 // pred_fallthru
      _
    %v43 = vld [vmem:[%s2] sm:$0xf]
    %v44 = vld [vmem:[%s2 + $0x4] sm:$0xf]
    %v45 = vld [vmem:[%s3] sm:$0xff]
    %v46 = vld [vmem:[%s3 + $0x8] sm:$0x11]
    %v47 = vld [vmem:[%s4] sm:$0x3]
    %v49 = vperm.slane %v47, 0
    %v50 = vperm.slane %v47, 1
    %v55 = vunpack.c.l.b16 %v43
    %v56 = vunpack.c.l.b16 %v44
    %v57 = vpack.c.b16 %v56, %v55
    %v60 = vunpack.c.l.b16 %v45
    %v61 = vunpack.c.h.b16 %v45
    %v62 = vunpack.c.l.b16 %v46
    %v63 = vunpack.c.h.b16 %v46
    %v64 = vpack.c.b16 %v62, %v60
    %v65 = vpack.c.b16 %v63, %v61
    %vm66 = vcmask 72704
    %v68 = vsel %vm66, %v57, 0
    %vm70 = vcmask 1043456
    %vm71 = vcmask 1044480
    %v72 = vsel %vm70, 4294967295, 65535
    %v73 = vsel %vm71, %v72, 0
    %v75 = vand.u32 %v64, %v73
    %v78 = vand.u32 %v65, %v73
    %80 = vmatpush.bf16.msra.mxu0 0
    %81 = vmatpush.bf16.msra.mxu0 0
    %82 = vmatpush.bf16.msra.mxu0 0
    %83 = vmatpush.bf16.msra.mxu0 0
    %84 = vmatpush.bf16.msra.mxu0 0
    %85 = vmatpush.bf16.msra.mxu0 0
    %86 = vmatpush.bf16.msra.mxu0 0
    %87 = vmatpush.bf16.msra.mxu0 %v75
    %88 = vmatmul.bf16.gmra.mxu0 %v68
    %v89 = vpop.f32.mrf.mxu0
    %v90 = vadd.f32 %v49, %v89
    %v91 = vpop.f32.mrf.mxu0
    %v92 = vadd.f32 %v49, %v91
    %93 = vdwg.mxu0
    %94 = vmatpush.bf16.msra.mxu0 0
    %95 = vmatpush.bf16.msra.mxu0 0
    %96 = vmatpush.bf16.msra.mxu0 0
    %97 = vmatpush.bf16.msra.mxu0 0
    %98 = vmatpush.bf16.msra.mxu0 0
    %99 = vmatpush.bf16.msra.mxu0 0
    %100 = vmatpush.bf16.msra.mxu0 0
    %101 = vmatpush.bf16.msra.mxu0 %v78
    %102 = vmatmul.bf16.gmra.mxu0 %v68
    %v103 = vpop.f32.mrf.mxu0
    %v104 = vadd.f32 %v50, %v103
    %v105 = vpop.f32.mrf.mxu0
    %v106 = vadd.f32 %v50, %v105
    %107 = vdwg.mxu0
    %v108 = vmax.f32 %v90, 0.0
    %v109 = vmax.f32 %v104, 0.0
    %v110 = vmax.f32 %v92, 0.0
    %v111 = vmax.f32 %v106, 0.0
    %v112 = vld [vmem:[%s1] sm:$0xf]
    %v113 = vld [vmem:[%s1 + $0x4] sm:$0xf]
    %v114 = vld [vmem:[%s5] sm:$0xf]
    %v115 = vld [vmem:[%s5 + $0x4] sm:$0xf]
    %v118 = vunpack.c.l.b16 %v112
    %v119 = vunpack.c.l.b16 %v113
    %v120 = vpack.c.b16 %v119, %v118
    %v123 = vunpack.c.l.b16 %v114
    %v124 = vunpack.c.l.b16 %v115
    %v125 = vpack.c.b16 %v124, %v123
    %vm127 = vcmask 130048
    %v129 = vsel %vm127, %v120, 0
    %131 = vmatpush.bf16.msra.mxu0 0
    %132 = vmatpush.bf16.msra.mxu0 0
    %133 = vmatpush.bf16.msra.mxu0 0
    %134 = vmatpush.bf16.msra.mxu0 0
    %135 = vmatpush.bf16.msra.mxu0 0
    %136 = vmatpush.bf16.msra.mxu0 0
    %137 = vmatpush.bf16.msra.mxu0 0
    %138 = vmatpush.bf16.msra.mxu0 %v125
    %139 = vmatmul.bf16.gmra.mxu0 %v129
    %v140 = vpop.f32.mrf.mxu0
    %v141 = vadd.f32 0.0, %v140
    %v142 = vpop.f32.mrf.mxu0
    %v143 = vadd.f32 0.0, %v142
    %144 = vdwg.mxu0
    %v145 = vld [vmem:[%s0] sm:$0xf]
    %v146 = vld [vmem:[%s0 + $0x4] sm:$0xf]
    %v147 = vunpack.c.l.bf16 %v145
    %v148 = vunpack.c.l.bf16 %v146
    %vm149 = vcmp.ge.f32.partialorder %v147, 0.0
    %vm150 = vcmp.ge.f32.partialorder %v148, 0.0
    %v151 = vmul.f32 %v147, 0.01
    %v152 = vmul.f32 %v148, 0.01
    %v153 = vsel %vm149, %v147, %v151
    %v154 = vsel %vm150, %v148, %v152
    %v155 = vpack.c.bf16 %v154, %v153
    %v156 = vld [vmem:[%s6] sm:$0xf]
    %v157 = vld [vmem:[%s6 + $0x4] sm:$0xf]
    %v158 = vld [vmem:[%s6 + $0x8] sm:$0xf]
    %v159 = vld [vmem:[%s6 + $0xc] sm:$0xf]
    %v160 = vld [vmem:[%s6 + $0x10] sm:$0xf]
    %v161 = vld [vmem:[%s6 + $0x14] sm:$0xf]
    %v162 = vld [vmem:[%s6 + $0x18] sm:$0xf]
    %v163 = vld [vmem:[%s6 + $0x1c] sm:$0xf]
    %vm164 = vcmp.ge.f32.partialorder %v141, 0.0
    %vm165 = vcmp.ge.f32.partialorder %v143, 0.0
    %v166 = vmul.f32 %v141, 0.01
    %v167 = vmul.f32 %v143, 0.01
    %v168 = vsel %vm164, %v141, %v166
    %v169 = vsel %vm165, %v143, %v167
    %v170 = vpack.c.bf16 %v169, %v168
    %v171 = vld [vmem:[%s7] sm:$0xf]
    %v172 = vld [vmem:[%s7 + $0x4] sm:$0xf]
    %v173 = vld [vmem:[%s7 + $0x8] sm:$0xf]
    %v174 = vld [vmem:[%s7 + $0xc] sm:$0xf]
    %v179 = vunpack.c.l.b16 %v171
    %v180 = vunpack.c.l.b16 %v172
    %v181 = vunpack.c.l.b16 %v173
    %v182 = vunpack.c.l.b16 %v174
    %v183 = vpack.c.b16 %v180, %v179
    %v184 = vpack.c.b16 %v182, %v181
    %vm187 = vcmask 261120
    %v189 = vsel %vm187, %v170, 0
    %191 = vmatpush.bf16.msra.mxu0 0
    %192 = vmatpush.bf16.msra.mxu0 0
    %193 = vmatpush.bf16.msra.mxu0 0
    %194 = vmatpush.bf16.msra.mxu0 0
    %195 = vmatpush.bf16.msra.mxu0 0
    %196 = vmatpush.bf16.msra.mxu0 0
    %197 = vmatpush.bf16.msra.mxu0 %v184
    %198 = vmatpush.bf16.msra.mxu0 %v183
    %199 = vmatmul.bf16.gmra.mxu0 %v189
    %v200 = vpop.f32.mrf.mxu0
    %v201 = vadd.f32 0.0, %v200
    %v202 = vpop.f32.mrf.mxu0
    %v203 = vadd.f32 0.0, %v202
    %204 = vdwg.mxu0
    %v213 = vunpack.c.l.b16 %v156
    %v214 = vunpack.c.l.b16 %v157
    %v215 = vunpack.c.l.b16 %v158
    %v216 = vunpack.c.l.b16 %v159
    %v217 = vunpack.c.l.b16 %v160
    %v218 = vunpack.c.l.b16 %v161
    %v219 = vunpack.c.l.b16 %v162
    %v220 = vunpack.c.l.b16 %v163
    %v221 = vpack.c.b16 %v214, %v213
    %v222 = vpack.c.b16 %v216, %v215
    %v223 = vpack.c.b16 %v218, %v217
    %v224 = vpack.c.b16 %v220, %v219
    %vm229 = vcmask 523264
    %v231 = vsel %vm229, %v155, 0
    %233 = vmatpush.bf16.msra.mxu0 0
    %234 = vmatpush.bf16.msra.mxu0 0
    %235 = vmatpush.bf16.msra.mxu0 0
    %236 = vmatpush.bf16.msra.mxu0 0
    %237 = vmatpush.bf16.msra.mxu0 %v224
    %238 = vmatpush.bf16.msra.mxu0 %v223
    %239 = vmatpush.bf16.msra.mxu0 %v222
    %240 = vmatpush.bf16.msra.mxu0 %v221
    %241 = vmatmul.bf16.gmra.mxu0 %v231
    %v242 = vpop.f32.mrf.mxu0
    %v243 = vadd.f32 %v201, %v242
    %v244 = vpop.f32.mrf.mxu0
    %v245 = vadd.f32 %v203, %v244
    %246 = vdwg.mxu0
    %v247 = vpack.c.bf16 %v110, %v108
    %v248 = vpack.c.bf16 %v111, %v109
    %v249 = vld [vmem:[%s8] sm:$0xf]
    %v250 = vld [vmem:[%s8 + $0x4] sm:$0xf]
    %v251 = vld [vmem:[%s8 + $0x8] sm:$0xf]
    %v252 = vld [vmem:[%s8 + $0xc] sm:$0xf]
    %v253 = vld [vmem:[%s8 + $0x10] sm:$0xf]
    %v254 = vld [vmem:[%s8 + $0x14] sm:$0xf]
    %v255 = vld [vmem:[%s8 + $0x18] sm:$0xf]
    %v256 = vld [vmem:[%s8 + $0x1c] sm:$0xf]
    %v257 = vld [vmem:[%s8 + $0x20] sm:$0xf]
    %v258 = vld [vmem:[%s8 + $0x24] sm:$0xf]
    %v259 = vld [vmem:[%s8 + $0x28] sm:$0xf]
    %v260 = vld [vmem:[%s8 + $0x2c] sm:$0xf]
    %v261 = vld [vmem:[%s8 + $0x30] sm:$0xf]
    %v262 = vld [vmem:[%s8 + $0x34] sm:$0xf]
    %v263 = vld [vmem:[%s8 + $0x38] sm:$0xf]
    %v264 = vld [vmem:[%s8 + $0x3c] sm:$0xf]
    %v265 = vld [vmem:[%s8 + $0x40] sm:$0xf]
    %v266 = vld [vmem:[%s8 + $0x44] sm:$0xf]
    %v267 = vld [vmem:[%s8 + $0x48] sm:$0xf]
    %v268 = vld [vmem:[%s8 + $0x4c] sm:$0xf]
    %v269 = vld [vmem:[%s8 + $0x50] sm:$0xf]
    %v270 = vld [vmem:[%s8 + $0x54] sm:$0xf]
    %v271 = vld [vmem:[%s8 + $0x58] sm:$0xf]
    %v272 = vld [vmem:[%s8 + $0x5c] sm:$0xf]
    %v273 = vld [vmem:[%s8 + $0x60] sm:$0xf]
    %v274 = vld [vmem:[%s8 + $0x64] sm:$0xf]
    %v275 = vld [vmem:[%s8 + $0x68] sm:$0xf]
    %v276 = vld [vmem:[%s8 + $0x6c] sm:$0xf]
    %v277 = vld [vmem:[%s8 + $0x70] sm:$0xf]
    %v278 = vld [vmem:[%s8 + $0x74] sm:$0xf]
    %v279 = vld [vmem:[%s8 + $0x78] sm:$0xf]
    %v280 = vld [vmem:[%s8 + $0x7c] sm:$0xf]
    %v313 = vunpack.c.l.b16 %v249
    %v314 = vunpack.c.l.b16 %v250
    %v315 = vunpack.c.l.b16 %v251
    %v316 = vunpack.c.l.b16 %v252
    %v317 = vunpack.c.l.b16 %v253
    %v318 = vunpack.c.l.b16 %v254
    %v319 = vunpack.c.l.b16 %v255
    %v320 = vunpack.c.l.b16 %v256
    %v321 = vunpack.c.l.b16 %v257
    %v322 = vunpack.c.l.b16 %v258
    %v323 = vunpack.c.l.b16 %v259
    %v324 = vunpack.c.l.b16 %v260
    %v325 = vunpack.c.l.b16 %v261
    %v326 = vunpack.c.l.b16 %v262
    %v327 = vunpack.c.l.b16 %v263
    %v328 = vunpack.c.l.b16 %v264
    %v329 = vunpack.c.l.b16 %v265
    %v330 = vunpack.c.l.b16 %v266
    %v331 = vunpack.c.l.b16 %v267
    %v332 = vunpack.c.l.b16 %v268
    %v333 = vunpack.c.l.b16 %v269
    %v334 = vunpack.c.l.b16 %v270
    %v335 = vunpack.c.l.b16 %v271
    %v336 = vunpack.c.l.b16 %v272
    %v337 = vunpack.c.l.b16 %v273
    %v338 = vunpack.c.l.b16 %v274
    %v339 = vunpack.c.l.b16 %v275
    %v340 = vunpack.c.l.b16 %v276
    %v341 = vunpack.c.l.b16 %v277
    %v342 = vunpack.c.l.b16 %v278
    %v343 = vunpack.c.l.b16 %v279
    %v344 = vunpack.c.l.b16 %v280
    %v345 = vpack.c.b16 %v314, %v313
    %v346 = vpack.c.b16 %v316, %v315
    %v347 = vpack.c.b16 %v318, %v317
    %v348 = vpack.c.b16 %v320, %v319
    %v349 = vpack.c.b16 %v322, %v321
    %v350 = vpack.c.b16 %v324, %v323
    %v351 = vpack.c.b16 %v326, %v325
    %v352 = vpack.c.b16 %v328, %v327
    %v353 = vpack.c.b16 %v330, %v329
    %v354 = vpack.c.b16 %v332, %v331
    %v355 = vpack.c.b16 %v334, %v333
    %v356 = vpack.c.b16 %v336, %v335
    %v357 = vpack.c.b16 %v338, %v337
    %v358 = vpack.c.b16 %v340, %v339
    %v359 = vpack.c.b16 %v342, %v341
    %v360 = vpack.c.b16 %v344, %v343
    %377 = vmatpush.bf16.msra.mxu0 %v352
    %378 = vmatpush.bf16.msra.mxu0 %v351
    %379 = vmatpush.bf16.msra.mxu0 %v350
    %380 = vmatpush.bf16.msra.mxu0 %v349
    %381 = vmatpush.bf16.msra.mxu0 %v348
    %382 = vmatpush.bf16.msra.mxu0 %v347
    %383 = vmatpush.bf16.msra.mxu0 %v346
    %384 = vmatpush.bf16.msra.mxu0 %v345
    %385 = vmatmul.bf16.gmra.mxu0 %v247
    %v386 = vpop.f32.mrf.mxu0
    %v387 = vadd.f32 0.0, %v386
    %v388 = vpop.f32.mrf.mxu0
    %v389 = vadd.f32 0.0, %v388
    %390 = vdwg.mxu0
    %391 = vmatpush.bf16.msra.mxu0 %v360
    %392 = vmatpush.bf16.msra.mxu0 %v359
    %393 = vmatpush.bf16.msra.mxu0 %v358
    %394 = vmatpush.bf16.msra.mxu0 %v357
    %395 = vmatpush.bf16.msra.mxu0 %v356
    %396 = vmatpush.bf16.msra.mxu0 %v355
    %397 = vmatpush.bf16.msra.mxu0 %v354
    %398 = vmatpush.bf16.msra.mxu0 %v353
    %399 = vmatmul.bf16.gmra.mxu0 %v248
    %v400 = vpop.f32.mrf.mxu0
    %v401 = vadd.f32 %v387, %v400
    %v402 = vpop.f32.mrf.mxu0
    %v403 = vadd.f32 %v389, %v402
    %404 = vdwg.mxu0
    %v405 = vadd.f32 %v243, %v401
    %v406 = vadd.f32 %v245, %v403
    %v407 = vld [vmem:[%s9] sm:$0x1]
    %v409 = vperm.slane %v407, 0
    %v411 = vadd.f32 %v405, %v409
    %v412 = vadd.f32 %v406, %v409
    %vm413 = vcmp.ge.f32.partialorder %v411, 0.0
    %vm414 = vcmp.ge.f32.partialorder %v412, 0.0
    %v415 = vmul.f32 %v411, 0.01
    %v416 = vmul.f32 %v412, 0.01
    %v417 = vsel %vm413, %v411, %v415
    %v418 = vsel %vm414, %v412, %v416
    %v419 = vpack.c.bf16 %v418, %v417
    %v420 = vld [vmem:[%s10] sm:$0xf]
    %v421 = vld [vmem:[%s10 + $0x4] sm:$0xf]
    %v422 = vld [vmem:[%s10 + $0x8] sm:$0xf]
    %v423 = vld [vmem:[%s10 + $0xc] sm:$0xf]
    %v424 = vld [vmem:[%s11] sm:$0x1]
    %v426 = vperm.slane %v424, 0
    %v432 = vunpack.c.l.b16 %v420
    %v433 = vunpack.c.l.b16 %v421
    %v434 = vunpack.c.l.b16 %v422
    %v435 = vunpack.c.l.b16 %v423
    %v436 = vpack.c.b16 %v433, %v432
    %v437 = vpack.c.b16 %v435, %v434
    %v441 = vsel %vm187, %v419, 0
    %443 = vmatpush.bf16.msra.mxu0 0
    %444 = vmatpush.bf16.msra.mxu0 0
    %445 = vmatpush.bf16.msra.mxu0 0
    %446 = vmatpush.bf16.msra.mxu0 0
    %447 = vmatpush.bf16.msra.mxu0 0
    %448 = vmatpush.bf16.msra.mxu0 0
    %449 = vmatpush.bf16.msra.mxu0 %v437
    %450 = vmatpush.bf16.msra.mxu0 %v436
    %451 = vmatmul.bf16.gmra.mxu0 %v441
    %v452 = vpop.f32.mrf.mxu0
    %v453 = vadd.f32 %v426, %v452
    %v454 = vpop.f32.mrf.mxu0
    %v455 = vadd.f32 %v426, %v454
    %456 = vdwg.mxu0
    %v457 = vpack.c.bf16 %v453, %v453
    %v458 = vpack.c.bf16 %v455, %v455
    %459 = vst [vmem:[#allocation2] sm:$0xf] %v457
    %460 = vst [vmem:[#allocation2 + $0x4] sm:$0xf] %v458
    // Predicated region
    $region50: #{tpu_custom_call.1} parent=1 // pred_check
      _
    $region51: #{tpu_custom_call.1} parent=1 // pred_check_branch
      %462 = sbr.rel (0) target = $region53
    $region52: #{tpu_custom_call.1} parent=1 // pred_region
      %464 = vsyncadd [#allocation3], 0
      %s465 = sshll.u32 [#allocation2], 4
      %s466 = int_to_ptr.vmem [resolvable:$true] %s465
      %s467 = sshll.u32 %s12, 4
      %s468 = int_to_ptr.hbm [resolvable:$true] %s467
      %473 = dma.vmem_to_hbm [thread:$0]  %s466, 128, %s468, [#allocation3], 64, 64, 4
    $region53: #{tpu_custom_call.1} parent=1 // pred_fallthru
      _
    // Predicated region
    $region54: #{tpu_custom_call.1} parent=1 // pred_check
      _
    $region55: #{tpu_custom_call.1} parent=1 // pred_check_branch
      %475 = sbr.rel (0) target = $region57
    $region56: #{tpu_custom_call.1} parent=1 // pred_region
      %477 = dma.done [#allocation3], 128
    $region57: #{tpu_custom_call.1} parent=1 // pred_fallthru
      _
    %478 = vsyncpa [#allocation3], 1

</llo_original>
